<compile_context>
chip_gen: v7x
topology: tpu7x:2x2x1
jax: 0.10.0
libtpu: 0.0.40
codegen_flags: <defaults>
</compile_context>

<pallas_src>
import functools
import math

import jax
import jax.numpy as jnp
import numpy as np
from jax import lax
from jax.experimental import pallas as pl
from jax.experimental.pallas import tpu as pltpu


def _round_up(v, m):
    return ((v + m - 1) // m) * m


# Above this chunk count the chunk->stack relayout uses lax.fori_loop.
_UNROLLED_CHUNK_LIMIT = 16
# Below this first-network-layer contraction depth, keep the per-chunk fold
# instead of the scratch relayout + single wide-K matmul.
_NET_FOLD_K_LIMIT = 128


# ----------------------------------------------------------------------------
# Fused kernel builder.
# ----------------------------------------------------------------------------
def _make_fused_kernel(*, block_rows, inp_chunk_dim, num_cembs, last_chunk,
                       red_dims, net_dims, compute_dtype, use_net_scratch,
                       w0_ref_slice, wn0_ref_slice):
    C = inp_chunk_dim
    D = red_dims[-1]                       # out_chunk_dim
    NB = num_cembs * block_rows            # stacked row count
    n_red = len(red_dims) - 1              # reducer layer count
    n_net = len(net_dims) - 1              # network layer count
    n_full = num_cembs if last_chunk == 0 else num_cembs - 1
    f32 = jnp.float32

    def kernel(*refs):
        i = 0
        x_ref = refs[i]; i += 1
        cembs_ref = refs[i]; i += 1
        red_w_refs = refs[i:i + n_red]; i += n_red
        red_b_refs = refs[i:i + n_red]; i += n_red
        net_w_refs = refs[i:i + n_net]; i += n_net
        net_b_refs = refs[i:i + n_net]; i += n_net
        out_ref = refs[i]; i += 1
        stk_ref = refs[i]; i += 1
        net_in_ref = refs[i] if use_net_scratch else None

        def mm(a, w):
            # MXU matmul: operands in the (possibly bf16) weight dtype,
            # accumulation always f32; elementwise work stays f32 (v5e-safe).
            return jnp.dot(a.astype(w.dtype), w, preferred_element_type=f32)

        # ------------------------------------------------------------------
        # 1) Chunk relayout: x[:, c*C:(c+1)*C] -> stk[c*block_rows:...,  :].
        #    Sublane-stacking all chunks lets every reducer layer run as ONE
        #    tall matmul (no per-chunk re-push of identical weights).  The
        #    cast to the compute dtype happens exactly once, here.
        # ------------------------------------------------------------------
        if num_cembs <= _UNROLLED_CHUNK_LIMIT:
            for c in range(n_full):
                stk_ref[c * block_rows:(c + 1) * block_rows, :] = (
                    x_ref[:, c * C:(c + 1) * C].astype(compute_dtype))
        else:
            def fill(c, carry):
                start = pl.multiple_of(c * C, C)
                stk_ref[pl.ds(c * block_rows, block_rows), :] = (
                    x_ref[:, pl.ds(start, C)].astype(compute_dtype))
                return carry
            lax.fori_loop(0, n_full, fill, 0, unroll=2)
        if last_chunk != 0:
            c = num_cembs - 1
            rows = slice(c * block_rows, (c + 1) * block_rows)
            # Ragged last chunk: zero-pad to C lanes inside the scratch.
            stk_ref[rows, :] = jnp.zeros((block_rows, C), compute_dtype)
            stk_ref[rows, :last_chunk] = (
                x_ref[:, c * C:c * C + last_chunk].astype(compute_dtype))

        # ------------------------------------------------------------------
        # 2) Reducer MLP for all chunks at once (tall matmuls).
        #    cemb_tab[c] = cembs[c] @ W0_cemb + b0; it is broadcast to the
        #    stacked rows via an exact one-hot matmul (tiny K = num_cembs).
        # ------------------------------------------------------------------
        if w0_ref_slice:
            w0_x = red_w_refs[0][:C, :]            # static ref slices (aligned)
            w0_c = red_w_refs[0][C:, :]
        else:
            w0_full = red_w_refs[0][...]
            w0_x = w0_full[:C, :]
            w0_c = w0_full[C:, :]
        b0 = red_b_refs[0][...].astype(f32)        # [1, h0]
        cemb_tab = mm(cembs_ref[...], w0_c) + b0   # [num_cembs, h0]

        rid = lax.broadcasted_iota(jnp.int32, (NB, num_cembs), 0)
        cid = lax.broadcasted_iota(jnp.int32, (NB, num_cembs), 1)
        onehot = ((rid >= cid * block_rows) &
                  (rid < cid * block_rows + block_rows)).astype(f32)

        h = mm(stk_ref[...], w0_x) + jnp.dot(onehot, cemb_tab,
                                             preferred_element_type=f32)
        if n_red > 1:
            h = jnp.maximum(h, 0.0)
        for l in range(1, n_red):
            h = mm(h, red_w_refs[l][...]) + red_b_refs[l][...].astype(f32)
            if l < n_red - 1:
                h = jnp.maximum(h, 0.0)
        # h: [NB, D] in f32 (stacked reducer output).

        # ------------------------------------------------------------------
        # 3) Chunk -> row relayout + first network layer.
        # ------------------------------------------------------------------
        bn0 = net_b_refs[0][...].astype(f32)
        if use_net_scratch:
            # Wide-K path: write chunk c's reducer output at lane offset c*D
            # of a VMEM scratch, then ONE K = num_cembs*D matmul.
            for c in range(num_cembs):
                net_in_ref[:, c * D:(c + 1) * D] = (
                    h[c * block_rows:(c + 1) * block_rows, :].astype(
                        compute_dtype))
            z = mm(net_in_ref[...], net_w_refs[0][...]) + bn0
        else:
            # num_cembs*D < 128: fold the relayout into small matmuls.
            if wn0_ref_slice:
                def wn0_block(c):
                    return net_w_refs[0][c * D:(c + 1) * D, :]
            else:
                wn0_full = net_w_refs[0][...]
                def wn0_block(c):
                    return wn0_full[c * D:(c + 1) * D, :]
            z = bn0
            for c in range(num_cembs):
                z = z + mm(h[c * block_rows:(c + 1) * block_rows, :],
                           wn0_block(c))
        if n_net > 1:
            z = jnp.maximum(z, 0.0)
        for l in range(1, n_net):
            z = mm(z, net_w_refs[l][...]) + net_b_refs[l][...].astype(f32)
            if l < n_net - 1:
                z = jnp.maximum(z, 0.0)

        out_ref[...] = z.astype(out_ref.dtype)

    return kernel


# ----------------------------------------------------------------------------
# Forward wrapper: one pallas_call, "parallel" batch grid over rows.
# ----------------------------------------------------------------------------
def chunk_squeezer_forward(x, params, *, n_in, inp_chunk_dim, out_chunk_dim,
                           block_rows=None, interpret=False):
    C = inp_chunk_dim
    num_cembs = int(math.ceil(n_in / C))
    last = n_in % C

    B = x.shape[0]
    assert x.shape[1] == n_in

    cembs = params["cembs"]
    red_w, red_b = params["red_w"], params["red_b"]
    net_w, net_b = params["net_w"], params["net_b"]

    red_dims = [red_w[0].shape[0]] + [w.shape[1] for w in red_w]
    net_dims = [net_w[0].shape[0]] + [w.shape[1] for w in net_w]
    assert red_dims[0] == C + cembs.shape[1]
    assert red_dims[-1] == out_chunk_dim
    assert net_dims[0] == out_chunk_dim * num_cembs
    n_out = net_dims[-1]
    D = out_chunk_dim

    compute_dtype = red_w[0].dtype                 # matmul-operand dtype
    use_net_scratch = net_dims[0] >= _NET_FOLD_K_LIMIT

    # Ref-slice weights only when slice offsets match the sublane packing of
    # the weight dtype; otherwise load once and slice the value.
    pack_rows = 16 if compute_dtype == jnp.bfloat16 else 8
    w0_ref_slice = (C % pack_rows == 0)
    wn0_ref_slice = (D % pack_rows == 0)

    cd_bytes = np.dtype(compute_dtype).itemsize
    invariant_bytes = sum(int(np.prod(a.shape)) * a.dtype.itemsize
                          for a in [cembs] + list(red_w) + list(red_b)
                          + list(net_w) + list(net_b))

    def vmem_estimate(br):
        nb = num_cembs * br
        est = 2 * invariant_bytes                       # double-buffered weights
        est += 2 * br * n_in * x.dtype.itemsize         # x tile (double-buffered)
        est += 2 * br * n_out * 4                       # out tile
        est += nb * C * cd_bytes                        # stacking scratch
        if use_net_scratch:
            est += br * net_dims[0] * cd_bytes          # net_in scratch
        est += 4 * nb * num_cembs                       # one-hot value
        est += 2 * nb * max(red_dims[1:]) * 4           # reducer activations
        est += 2 * br * max(net_dims) * 4               # network activations
        return est

    # Batch tiling: big tiles for HBM roofline, >=2 grid steps for non-tiny
    # batches (v7x megacore: "parallel" axis shards across both TensorCores;
    # the extra step costs ~0.35us on 1-TC chips), sized against VMEM.
    mult = 16 if (compute_dtype == jnp.bfloat16 or x.dtype == jnp.bfloat16) else 8
    cap = 1024 if x.dtype == jnp.bfloat16 else 512
    budget = 28 * 1024 * 1024
    if block_rows is None:
        if B < 16:
            block_rows = _round_up(B, mult)             # tiny batch: one block
        else:
            block_rows = min(cap, _round_up((B + 1) // 2, mult))
        while block_rows > mult and vmem_estimate(block_rows) > budget:
            block_rows = _round_up(block_rows // 2, mult)

    grid_rows = -(-B // block_rows)
    B_pad = grid_rows * block_rows
    if B_pad != B:
        x = jnp.pad(x, ((0, B_pad - B), (0, 0)))

    kernel = _make_fused_kernel(
        block_rows=block_rows, inp_chunk_dim=C, num_cembs=num_cembs,
        last_chunk=last, red_dims=red_dims, net_dims=net_dims,
        compute_dtype=compute_dtype, use_net_scratch=use_net_scratch,
        w0_ref_slice=w0_ref_slice, wn0_ref_slice=wn0_ref_slice)

    def inv_spec(shape):
        nd = len(shape)
        return pl.BlockSpec(shape, lambda i, nd=nd: (0,) * nd)

    in_specs = ([pl.BlockSpec((block_rows, n_in), lambda i: (i, 0)),
                 inv_spec(cembs.shape)]
                + [inv_spec(w.shape) for w in red_w]
                + [inv_spec(b.shape) for b in red_b]
                + [inv_spec(w.shape) for w in net_w]
                + [inv_spec(b.shape) for b in net_b])

    scratch_shapes = [pltpu.VMEM((num_cembs * block_rows, C), compute_dtype)]
    if use_net_scratch:
        scratch_shapes.append(pltpu.VMEM((block_rows, net_dims[0]),
                                         compute_dtype))

    vmem_limit = int(min(max(32 * 1024 * 1024, 2 * vmem_estimate(block_rows)),
                         48 * 1024 * 1024))

    out = pl.pallas_call(
        kernel,
        grid=(grid_rows,),
        in_specs=in_specs,
        out_specs=pl.BlockSpec((block_rows, n_out), lambda i: (i, 0)),
        out_shape=jax.ShapeDtypeStruct((B_pad, n_out), jnp.float32),
        scratch_shapes=scratch_shapes,
        compiler_params=pltpu.CompilerParams(
            dimension_semantics=("parallel",),
            vmem_limit_bytes=vmem_limit),
        interpret=interpret,
    )(x, cembs, *red_w, *red_b, *net_w, *net_b)

    return out[:B] if B_pad != B else out


# ----------------------------------------------------------------------------
# Parameters: pre-transposed weights [d_in, d_out], separate [1, d] f32 biases.
# ----------------------------------------------------------------------------
def build_params(key, *, n_in, n_out, inp_chunk_dim, out_chunk_dim, cemb_size,
                 cemb_init_std, red_layers, net_layers,
                 weight_dtype=jnp.float32):
    num_cembs = int(math.ceil(n_in / inp_chunk_dim))
    key, kc = jax.random.split(key)
    cembs = cemb_init_std * jax.random.normal(
        kc, (num_cembs, cemb_size), jnp.float32)

    red_dims = [inp_chunk_dim + cemb_size] + list(red_layers) + [out_chunk_dim]
    net_dims = [out_chunk_dim * num_cembs] + list(net_layers) + [n_out]

    def make_mlp(key, dims):
        ws, bs = [], []
        for i in range(len(dims) - 1):
            key, kw, kb = jax.random.split(key, 3)
            w = jax.random.normal(kw, (dims[i], dims[i + 1]),
                                  jnp.float32) / np.sqrt(dims[i])
            b = 0.1 * jax.random.normal(kb, (1, dims[i + 1]), jnp.float32)
            ws.append(w.astype(weight_dtype))   # pre-transposed [d_in, d_out]
            bs.append(b)                        # separate biases, stay f32
        return key, ws, bs

    key, red_w, red_b = make_mlp(key, red_dims)
    key, net_w, net_b = make_mlp(key, net_dims)

    return {"cembs": cembs, "red_w": red_w, "red_b": red_b,
            "net_w": net_w, "net_b": net_b}


# ----------------------------------------------------------------------------
# Pure-JAX reference mirroring the PyTorch forward (pad/split/cat structure).
# ----------------------------------------------------------------------------
def chunk_squeezer_ref(x, params, *, n_in, inp_chunk_dim, out_chunk_dim):
    C = inp_chunk_dim
    num_cembs = int(math.ceil(n_in / C))
    last = n_in % C
    pad = C - last if last != 0 else 0
    B = x.shape[0]
    if pad > 0:
        x = jnp.pad(x, ((0, 0), (0, pad)))
    chunks = jnp.concatenate(
        [x[:, c * C:(c + 1) * C] for c in range(num_cembs)], axis=0)
    cembs = params["cembs"].astype(jnp.float32)
    cembs_rep = jnp.concatenate(
        [jnp.broadcast_to(cembs[c:c + 1], (B, cembs.shape[1]))
         for c in range(num_cembs)], axis=0)
    red_in = jnp.concatenate([chunks, cembs_rep], axis=1)

    def mlp(h, ws, bs):
        for i, (w, b) in enumerate(zip(ws, bs)):
            h = h @ w.astype(jnp.float32) + b
            if i < len(ws) - 1:
                h = jnp.maximum(h, 0.0)
        return h

    red_out = mlp(red_in, params["red_w"], params["red_b"])
    net_in = jnp.concatenate(
        [red_out[c * B:(c + 1) * B] for c in range(num_cembs)], axis=1)
    return mlp(net_in, params["net_w"], params["net_b"])


# ----------------------------------------------------------------------------
if __name__ == "__main__":
    # Module hyperparameters (small, consistent with the forward pass).
    n_in = 50
    n_out = 4
    inp_chunk_dim = 16     # -> num_cembs = ceil(50/16) = 4, ragged last chunk
    out_chunk_dim = 8
    cemb_size = 8
    cemb_init_std = 1.0
    red_layers = (32, 32)
    net_layers = (32, 32)

    key = jax.random.PRNGKey(0)
    key, kx, kx2 = jax.random.split(key, 3)
    x = jax.random.normal(kx, (4, n_in), jnp.float32)
    x_big = jax.random.normal(kx2, (96, n_in), jnp.float32)

    common = dict(n_in=n_in, n_out=n_out, inp_chunk_dim=inp_chunk_dim,
                  out_chunk_dim=out_chunk_dim, cemb_size=cemb_size,
                  cemb_init_std=cemb_init_std, red_layers=red_layers,
                  net_layers=net_layers)
    params = build_params(key, **common)

    fwd = jax.jit(functools.partial(
        chunk_squeezer_forward, n_in=n_in, inp_chunk_dim=inp_chunk_dim,
        out_chunk_dim=out_chunk_dim))

    # f32, tiny batch (single whole-batch block).
    y = jax.block_until_ready(fwd(x, params))
    assert y.shape == (4, n_out), y.shape
    y_ref = chunk_squeezer_ref(x, params, n_in=n_in,
                               inp_chunk_dim=inp_chunk_dim,
                               out_chunk_dim=out_chunk_dim)
    np.testing.assert_allclose(np.asarray(y), np.asarray(y_ref),
                               rtol=1e-5, atol=1e-5)

    # f32, batch big enough for a multi-step "parallel" grid (megacore path).
    y2 = jax.block_until_ready(fwd(x_big, params))
    assert y2.shape == (96, n_out), y2.shape
    y2_ref = chunk_squeezer_ref(x_big, params, n_in=n_in,
                                inp_chunk_dim=inp_chunk_dim,
                                out_chunk_dim=out_chunk_dim)
    np.testing.assert_allclose(np.asarray(y2), np.asarray(y2_ref),
                               rtol=1e-5, atol=1e-5)

    # bf16 MXU-operand variant (v6e/v7x): bf16 weights + bf16 matmul operands,
    # f32 accumulation, f32 elementwise (v5e-safe). Loose numeric check.
    params_bf16 = build_params(key, weight_dtype=jnp.bfloat16, **common)
    y_bf16 = jax.block_until_ready(fwd(x, params_bf16))
    assert y_bf16.shape == (4, n_out)
    np.testing.assert_allclose(np.asarray(y_bf16), np.asarray(y_ref),
                               rtol=1e-1, atol=1e-1)

    # TODO(synk): `dynamic_biases` raises NotImplementedError in the PyTorch
    # module itself, so it is intentionally not implemented here.

    print("KERNEL_OK")
</pallas_src>

<mosaic_0001>
module attributes {stable_mosaic.version = 11 : i64} {
  func.func @kernel(%arg0: i32, %arg1: memref<8x50xf32, #tpu.memory_space<vmem>>, %arg2: memref<4x8xf32, #tpu.memory_space<vmem>>, %arg3: memref<24x32xf32, #tpu.memory_space<vmem>>, %arg4: memref<32x32xf32, #tpu.memory_space<vmem>>, %arg5: memref<32x8xf32, #tpu.memory_space<vmem>>, %arg6: memref<1x32xf32, #tpu.memory_space<vmem>>, %arg7: memref<1x32xf32, #tpu.memory_space<vmem>>, %arg8: memref<1x8xf32, #tpu.memory_space<vmem>>, %arg9: memref<32x32xf32, #tpu.memory_space<vmem>>, %arg10: memref<32x32xf32, #tpu.memory_space<vmem>>, %arg11: memref<32x4xf32, #tpu.memory_space<vmem>>, %arg12: memref<1x32xf32, #tpu.memory_space<vmem>>, %arg13: memref<1x32xf32, #tpu.memory_space<vmem>>, %arg14: memref<1x4xf32, #tpu.memory_space<vmem>>, %arg15: memref<8x4xf32, #tpu.memory_space<vmem>>, %arg16: memref<32x16xf32, #tpu.memory_space<vmem>>) attributes {dimension_semantics = [#tpu.dimension_semantics<parallel>], iteration_bounds = array<i64: 1>, scalar_prefetch = 0 : i64, scratch_operands = 1 : i64, tpu.core_type = #tpu.core_type<tc>, window_params = [{transform_indices = @transform_0, window_bounds = array<i64: 8, 50>}, {pipeline_mode = #tpu.pipeline_mode<synchronous>, transform_indices = @transform_1, window_bounds = array<i64: 4, 8>}, {pipeline_mode = #tpu.pipeline_mode<synchronous>, transform_indices = @transform_2, window_bounds = array<i64: 24, 32>}, {pipeline_mode = #tpu.pipeline_mode<synchronous>, transform_indices = @transform_3, window_bounds = array<i64: 32, 32>}, {pipeline_mode = #tpu.pipeline_mode<synchronous>, transform_indices = @transform_4, window_bounds = array<i64: 32, 8>}, {pipeline_mode = #tpu.pipeline_mode<synchronous>, transform_indices = @transform_5, window_bounds = array<i64: 1, 32>}, {pipeline_mode = #tpu.pipeline_mode<synchronous>, transform_indices = @transform_6, window_bounds = array<i64: 1, 32>}, {pipeline_mode = #tpu.pipeline_mode<synchronous>, transform_indices = @transform_7, window_bounds = array<i64: 1, 8>}, {pipeline_mode = #tpu.pipeline_mode<synchronous>, transform_indices = @transform_8, window_bounds = array<i64: 32, 32>}, {pipeline_mode = #tpu.pipeline_mode<synchronous>, transform_indices = @transform_9, window_bounds = array<i64: 32, 32>}, {pipeline_mode = #tpu.pipeline_mode<synchronous>, transform_indices = @transform_10, window_bounds = array<i64: 32, 4>}, {pipeline_mode = #tpu.pipeline_mode<synchronous>, transform_indices = @transform_11, window_bounds = array<i64: 1, 32>}, {pipeline_mode = #tpu.pipeline_mode<synchronous>, transform_indices = @transform_12, window_bounds = array<i64: 1, 32>}, {pipeline_mode = #tpu.pipeline_mode<synchronous>, transform_indices = @transform_13, window_bounds = array<i64: 1, 4>}, {transform_indices = @transform_14, window_bounds = array<i64: 8, 4>}]} {
    %c0 = arith.constant 0 : index
    %c0_0 = arith.constant 0 : index
    %0 = vector.load %arg1[%c0, %c0_0] : memref<8x50xf32, #tpu.memory_space<vmem>>, vector<8x16xf32>
    %c0_1 = arith.constant 0 : index
    %c0_2 = arith.constant 0 : index
    %1 = vector.load %arg16[%c0_1, %c0_2] : memref<32x16xf32, #tpu.memory_space<vmem>>, vector<8x16xf32>
    tpu.vector_store %arg16[%c0_1, %c0_2], %0 {strides = array<i32>} : memref<32x16xf32, #tpu.memory_space<vmem>>, vector<8x16xf32>,
    %c0_3 = arith.constant 0 : index
    %c16 = arith.constant 16 : index
    %2 = vector.load %arg1[%c0_3, %c16] : memref<8x50xf32, #tpu.memory_space<vmem>>, vector<8x16xf32>
    %c8 = arith.constant 8 : index
    %c0_4 = arith.constant 0 : index
    %3 = vector.load %arg16[%c8, %c0_4] : memref<32x16xf32, #tpu.memory_space<vmem>>, vector<8x16xf32>
    tpu.vector_store %arg16[%c8, %c0_4], %2 {strides = array<i32>} : memref<32x16xf32, #tpu.memory_space<vmem>>, vector<8x16xf32>,
    %c0_5 = arith.constant 0 : index
    %c32 = arith.constant 32 : index
    %4 = vector.load %arg1[%c0_5, %c32] : memref<8x50xf32, #tpu.memory_space<vmem>>, vector<8x16xf32>
    %c16_6 = arith.constant 16 : index
    %c0_7 = arith.constant 0 : index
    %5 = vector.load %arg16[%c16_6, %c0_7] : memref<32x16xf32, #tpu.memory_space<vmem>>, vector<8x16xf32>
    tpu.vector_store %arg16[%c16_6, %c0_7], %4 {strides = array<i32>} : memref<32x16xf32, #tpu.memory_space<vmem>>, vector<8x16xf32>,
    %cst = arith.constant 0.000000e+00 : f32
    %6 = vector.broadcast %cst : f32 to vector<8x16xf32>
    %c24 = arith.constant 24 : index
    %c0_8 = arith.constant 0 : index
    %7 = vector.load %arg16[%c24, %c0_8] : memref<32x16xf32, #tpu.memory_space<vmem>>, vector<8x16xf32>
    tpu.vector_store %arg16[%c24, %c0_8], %6 {strides = array<i32>} : memref<32x16xf32, #tpu.memory_space<vmem>>, vector<8x16xf32>,
    %c0_9 = arith.constant 0 : index
    %c48 = arith.constant 48 : index
    %8 = vector.load %arg1[%c0_9, %c48] : memref<8x50xf32, #tpu.memory_space<vmem>>, vector<8x2xf32>
    %c24_10 = arith.constant 24 : index
    %c0_11 = arith.constant 0 : index
    %9 = vector.load %arg16[%c24_10, %c0_11] : memref<32x16xf32, #tpu.memory_space<vmem>>, vector<8x2xf32>
    tpu.vector_store %arg16[%c24_10, %c0_11], %8 {strides = array<i32>} : memref<32x16xf32, #tpu.memory_space<vmem>>, vector<8x2xf32>,
    %c0_12 = arith.constant 0 : index
    %c0_13 = arith.constant 0 : index
    %10 = vector.load %arg3[%c0_12, %c0_13] : memref<24x32xf32, #tpu.memory_space<vmem>>, vector<16x32xf32>
    %c16_14 = arith.constant 16 : index
    %c0_15 = arith.constant 0 : index
    %11 = vector.load %arg3[%c16_14, %c0_15] : memref<24x32xf32, #tpu.memory_space<vmem>>, vector<8x32xf32>
    %c0_16 = arith.constant 0 : index
    %c0_17 = arith.constant 0 : index
    %12 = vector.load %arg6[%c0_16, %c0_17] : memref<1x32xf32, #tpu.memory_space<vmem>>, vector<1x32xf32>
    %c0_18 = arith.constant 0 : index
    %c0_19 = arith.constant 0 : index
    %13 = vector.load %arg2[%c0_18, %c0_19] : memref<4x8xf32, #tpu.memory_space<vmem>>, vector<4x8xf32>
    %cst_20 = arith.constant dense<0.000000e+00> : vector<4x32xf32>
    %14 = tpu.matmul %13, %11, %cst_20 {dimension_numbers = #tpu.dot_dimension_numbers<[1], [0], [0], [1], [0, 0, 1, 1], [], []>} : vector<4x8xf32>, vector<8x32xf32>, vector<4x32xf32> -> vector<4x32xf32>
    %15 = vector.broadcast %12 : vector<1x32xf32> to vector<4x32xf32>
    %16 = arith.addf %14, %15 : vector<4x32xf32>
    %17 = tpu.iota {dimensions = array<i32: 0>} : vector<32x4xi32>
    %18 = tpu.iota {dimensions = array<i32: 1>} : vector<32x4xi32>
    %c8_i32 = arith.constant 8 : i32
    %19 = vector.broadcast %c8_i32 : i32 to vector<32x4xi32>
    %20 = arith.muli %18, %19 : vector<32x4xi32>
    %21 = arith.cmpi sge, %17, %20 : vector<32x4xi32>
    %c8_i32_21 = arith.constant 8 : i32
    %22 = vector.broadcast %c8_i32_21 : i32 to vector<32x4xi32>
    %23 = arith.muli %18, %22 : vector<32x4xi32>
    %c8_i32_22 = arith.constant 8 : i32
    %24 = vector.broadcast %c8_i32_22 : i32 to vector<32x4xi32>
    %25 = arith.addi %23, %24 : vector<32x4xi32>
    %26 = arith.cmpi slt, %17, %25 : vector<32x4xi32>
    %27 = arith.andi %21, %26 : vector<32x4xi1>
    %28 = arith.extui %27 : vector<32x4xi1> to vector<32x4xi32>
    %29 = arith.sitofp %28 : vector<32x4xi32> to vector<32x4xf32>
    %c0_23 = arith.constant 0 : index
    %c0_24 = arith.constant 0 : index
    %30 = vector.load %arg16[%c0_23, %c0_24] : memref<32x16xf32, #tpu.memory_space<vmem>>, vector<32x16xf32>
    %cst_25 = arith.constant dense<0.000000e+00> : vector<32x32xf32>
    %31 = tpu.matmul %30, %10, %cst_25 {dimension_numbers = #tpu.dot_dimension_numbers<[1], [0], [0], [1], [0, 0, 1, 1], [], []>} : vector<32x16xf32>, vector<16x32xf32>, vector<32x32xf32> -> vector<32x32xf32>
    %cst_26 = arith.constant dense<0.000000e+00> : vector<32x32xf32>
    %32 = tpu.matmul %29, %16, %cst_26 {dimension_numbers = #tpu.dot_dimension_numbers<[1], [0], [0], [1], [0, 0, 1, 1], [], []>} : vector<32x4xf32>, vector<4x32xf32>, vector<32x32xf32> -> vector<32x32xf32>
    %33 = arith.addf %31, %32 : vector<32x32xf32>
    %cst_27 = arith.constant 0.000000e+00 : f32
    %34 = vector.broadcast %cst_27 : f32 to vector<32x32xf32>
    %35 = arith.maximumf %33, %34 : vector<32x32xf32>
    %c0_28 = arith.constant 0 : index
    %c0_29 = arith.constant 0 : index
    %36 = vector.load %arg4[%c0_28, %c0_29] : memref<32x32xf32, #tpu.memory_space<vmem>>, vector<32x32xf32>
    %cst_30 = arith.constant dense<0.000000e+00> : vector<32x32xf32>
    %37 = tpu.matmul %35, %36, %cst_30 {dimension_numbers = #tpu.dot_dimension_numbers<[1], [0], [0], [1], [0, 0, 1, 1], [], []>} : vector<32x32xf32>, vector<32x32xf32>, vector<32x32xf32> -> vector<32x32xf32>
    %c0_31 = arith.constant 0 : index
    %c0_32 = arith.constant 0 : index
    %38 = vector.load %arg7[%c0_31, %c0_32] : memref<1x32xf32, #tpu.memory_space<vmem>>, vector<1x32xf32>
    %39 = vector.broadcast %38 : vector<1x32xf32> to vector<32x32xf32>
    %40 = arith.addf %37, %39 : vector<32x32xf32>
    %cst_33 = arith.constant 0.000000e+00 : f32
    %41 = vector.broadcast %cst_33 : f32 to vector<32x32xf32>
    %42 = arith.maximumf %40, %41 : vector<32x32xf32>
    %c0_34 = arith.constant 0 : index
    %c0_35 = arith.constant 0 : index
    %43 = vector.load %arg5[%c0_34, %c0_35] : memref<32x8xf32, #tpu.memory_space<vmem>>, vector<32x8xf32>
    %cst_36 = arith.constant dense<0.000000e+00> : vector<32x8xf32>
    %44 = tpu.matmul %42, %43, %cst_36 {dimension_numbers = #tpu.dot_dimension_numbers<[1], [0], [0], [1], [0, 0, 1, 1], [], []>} : vector<32x32xf32>, vector<32x8xf32>, vector<32x8xf32> -> vector<32x8xf32>
    %c0_37 = arith.constant 0 : index
    %c0_38 = arith.constant 0 : index
    %45 = vector.load %arg8[%c0_37, %c0_38] : memref<1x8xf32, #tpu.memory_space<vmem>>, vector<1x8xf32>
    %46 = vector.broadcast %45 : vector<1x8xf32> to vector<32x8xf32>
    %47 = arith.addf %44, %46 : vector<32x8xf32>
    %c0_39 = arith.constant 0 : index
    %c0_40 = arith.constant 0 : index
    %48 = vector.load %arg12[%c0_39, %c0_40] : memref<1x32xf32, #tpu.memory_space<vmem>>, vector<1x32xf32>
    %49 = vector.extract_strided_slice %47 {offsets = [0, 0], sizes = [8, 8], strides = [1, 1]} : vector<32x8xf32> to vector<8x8xf32>
    %c0_41 = arith.constant 0 : index
    %c0_42 = arith.constant 0 : index
    %50 = vector.load %arg9[%c0_41, %c0_42] : memref<32x32xf32, #tpu.memory_space<vmem>>, vector<8x32xf32>
    %cst_43 = arith.constant dense<0.000000e+00> : vector<8x32xf32>
    %51 = tpu.matmul %49, %50, %cst_43 {dimension_numbers = #tpu.dot_dimension_numbers<[1], [0], [0], [1], [0, 0, 1, 1], [], []>} : vector<8x8xf32>, vector<8x32xf32>, vector<8x32xf32> -> vector<8x32xf32>
    %52 = vector.broadcast %48 : vector<1x32xf32> to vector<8x32xf32>
    %53 = arith.addf %52, %51 : vector<8x32xf32>
    %54 = vector.extract_strided_slice %47 {offsets = [8, 0], sizes = [8, 8], strides = [1, 1]} : vector<32x8xf32> to vector<8x8xf32>
    %c8_44 = arith.constant 8 : index
    %c0_45 = arith.constant 0 : index
    %55 = vector.load %arg9[%c8_44, %c0_45] : memref<32x32xf32, #tpu.memory_space<vmem>>, vector<8x32xf32>
    %cst_46 = arith.constant dense<0.000000e+00> : vector<8x32xf32>
    %56 = tpu.matmul %54, %55, %cst_46 {dimension_numbers = #tpu.dot_dimension_numbers<[1], [0], [0], [1], [0, 0, 1, 1], [], []>} : vector<8x8xf32>, vector<8x32xf32>, vector<8x32xf32> -> vector<8x32xf32>
    %57 = arith.addf %53, %56 : vector<8x32xf32>
    %58 = vector.extract_strided_slice %47 {offsets = [16, 0], sizes = [8, 8], strides = [1, 1]} : vector<32x8xf32> to vector<8x8xf32>
    %c16_47 = arith.constant 16 : index
    %c0_48 = arith.constant 0 : index
    %59 = vector.load %arg9[%c16_47, %c0_48] : memref<32x32xf32, #tpu.memory_space<vmem>>, vector<8x32xf32>
    %cst_49 = arith.constant dense<0.000000e+00> : vector<8x32xf32>
    %60 = tpu.matmul %58, %59, %cst_49 {dimension_numbers = #tpu.dot_dimension_numbers<[1], [0], [0], [1], [0, 0, 1, 1], [], []>} : vector<8x8xf32>, vector<8x32xf32>, vector<8x32xf32> -> vector<8x32xf32>
    %61 = arith.addf %57, %60 : vector<8x32xf32>
    %62 = vector.extract_strided_slice %47 {offsets = [24, 0], sizes = [8, 8], strides = [1, 1]} : vector<32x8xf32> to vector<8x8xf32>
    %c24_50 = arith.constant 24 : index
    %c0_51 = arith.constant 0 : index
    %63 = vector.load %arg9[%c24_50, %c0_51] : memref<32x32xf32, #tpu.memory_space<vmem>>, vector<8x32xf32>
    %cst_52 = arith.constant dense<0.000000e+00> : vector<8x32xf32>
    %64 = tpu.matmul %62, %63, %cst_52 {dimension_numbers = #tpu.dot_dimension_numbers<[1], [0], [0], [1], [0, 0, 1, 1], [], []>} : vector<8x8xf32>, vector<8x32xf32>, vector<8x32xf32> -> vector<8x32xf32>
    %65 = arith.addf %61, %64 : vector<8x32xf32>
    %cst_53 = arith.constant 0.000000e+00 : f32
    %66 = vector.broadcast %cst_53 : f32 to vector<8x32xf32>
    %67 = arith.maximumf %65, %66 : vector<8x32xf32>
    %c0_54 = arith.constant 0 : index
    %c0_55 = arith.constant 0 : index
    %68 = vector.load %arg10[%c0_54, %c0_55] : memref<32x32xf32, #tpu.memory_space<vmem>>, vector<32x32xf32>
    %cst_56 = arith.constant dense<0.000000e+00> : vector<8x32xf32>
    %69 = tpu.matmul %67, %68, %cst_56 {dimension_numbers = #tpu.dot_dimension_numbers<[1], [0], [0], [1], [0, 0, 1, 1], [], []>} : vector<8x32xf32>, vector<32x32xf32>, vector<8x32xf32> -> vector<8x32xf32>
    %c0_57 = arith.constant 0 : index
    %c0_58 = arith.constant 0 : index
    %70 = vector.load %arg13[%c0_57, %c0_58] : memref<1x32xf32, #tpu.memory_space<vmem>>, vector<1x32xf32>
    %71 = vector.broadcast %70 : vector<1x32xf32> to vector<8x32xf32>
    %72 = arith.addf %69, %71 : vector<8x32xf32>
    %cst_59 = arith.constant 0.000000e+00 : f32
    %73 = vector.broadcast %cst_59 : f32 to vector<8x32xf32>
    %74 = arith.maximumf %72, %73 : vector<8x32xf32>
    %c0_60 = arith.constant 0 : index
    %c0_61 = arith.constant 0 : index
    %75 = vector.load %arg11[%c0_60, %c0_61] : memref<32x4xf32, #tpu.memory_space<vmem>>, vector<32x4xf32>
    %cst_62 = arith.constant dense<0.000000e+00> : vector<8x4xf32>
    %76 = tpu.matmul %74, %75, %cst_62 {dimension_numbers = #tpu.dot_dimension_numbers<[1], [0], [0], [1], [0, 0, 1, 1], [], []>} : vector<8x32xf32>, vector<32x4xf32>, vector<8x4xf32> -> vector<8x4xf32>
    %c0_63 = arith.constant 0 : index
    %c0_64 = arith.constant 0 : index
    %77 = vector.load %arg14[%c0_63, %c0_64] : memref<1x4xf32, #tpu.memory_space<vmem>>, vector<1x4xf32>
    %78 = vector.broadcast %77 : vector<1x4xf32> to vector<8x4xf32>
    %79 = arith.addf %76, %78 : vector<8x4xf32>
    %c0_65 = arith.constant 0 : index
    %c0_66 = arith.constant 0 : index
    %80 = vector.load %arg15[%c0_65, %c0_66] : memref<8x4xf32, #tpu.memory_space<vmem>>, vector<8x4xf32>
    tpu.vector_store %arg15[%c0_65, %c0_66], %79 {strides = array<i32>} : memref<8x4xf32, #tpu.memory_space<vmem>>, vector<8x4xf32>,
    return
  }
  func.func @transform_0(%arg0: i32) -> (i32, i32) {
    %c0_i32 = arith.constant 0 : i32
    %c0_i32_0 = arith.constant 0 : i32
    return %arg0, %c0_i32 : i32, i32
  }
  func.func @transform_1(%arg0: i32) -> (i32, i32) {
    %c0_i32 = arith.constant 0 : i32
    %c0_i32_0 = arith.constant 0 : i32
    %c0_i32_1 = arith.constant 0 : i32
    return %c0_i32, %c0_i32_0 : i32, i32
  }
  func.func @transform_2(%arg0: i32) -> (i32, i32) {
    %c0_i32 = arith.constant 0 : i32
    %c0_i32_0 = arith.constant 0 : i32
    %c0_i32_1 = arith.constant 0 : i32
    return %c0_i32, %c0_i32_0 : i32, i32
  }
  func.func @transform_3(%arg0: i32) -> (i32, i32) {
    %c0_i32 = arith.constant 0 : i32
    %c0_i32_0 = arith.constant 0 : i32
    %c0_i32_1 = arith.constant 0 : i32
    return %c0_i32, %c0_i32_0 : i32, i32
  }
  func.func @transform_4(%arg0: i32) -> (i32, i32) {
    %c0_i32 = arith.constant 0 : i32
    %c0_i32_0 = arith.constant 0 : i32
    %c0_i32_1 = arith.constant 0 : i32
    return %c0_i32, %c0_i32_0 : i32, i32
  }
  func.func @transform_5(%arg0: i32) -> (i32, i32) {
    %c0_i32 = arith.constant 0 : i32
    %c0_i32_0 = arith.constant 0 : i32
    %c0_i32_1 = arith.constant 0 : i32
    return %c0_i32, %c0_i32_0 : i32, i32
  }
  func.func @transform_6(%arg0: i32) -> (i32, i32) {
    %c0_i32 = arith.constant 0 : i32
    %c0_i32_0 = arith.constant 0 : i32
    %c0_i32_1 = arith.constant 0 : i32
    return %c0_i32, %c0_i32_0 : i32, i32
  }
  func.func @transform_7(%arg0: i32) -> (i32, i32) {
    %c0_i32 = arith.constant 0 : i32
    %c0_i32_0 = arith.constant 0 : i32
    %c0_i32_1 = arith.constant 0 : i32
    return %c0_i32, %c0_i32_0 : i32, i32
  }
  func.func @transform_8(%arg0: i32) -> (i32, i32) {
    %c0_i32 = arith.constant 0 : i32
    %c0_i32_0 = arith.constant 0 : i32
    %c0_i32_1 = arith.constant 0 : i32
    return %c0_i32, %c0_i32_0 : i32, i32
  }
  func.func @transform_9(%arg0: i32) -> (i32, i32) {
    %c0_i32 = arith.constant 0 : i32
    %c0_i32_0 = arith.constant 0 : i32
    %c0_i32_1 = arith.constant 0 : i32
    return %c0_i32, %c0_i32_0 : i32, i32
  }
  func.func @transform_10(%arg0: i32) -> (i32, i32) {
    %c0_i32 = arith.constant 0 : i32
    %c0_i32_0 = arith.constant 0 : i32
    %c0_i32_1 = arith.constant 0 : i32
    return %c0_i32, %c0_i32_0 : i32, i32
  }
  func.func @transform_11(%arg0: i32) -> (i32, i32) {
    %c0_i32 = arith.constant 0 : i32
    %c0_i32_0 = arith.constant 0 : i32
    %c0_i32_1 = arith.constant 0 : i32
    return %c0_i32, %c0_i32_0 : i32, i32
  }
  func.func @transform_12(%arg0: i32) -> (i32, i32) {
    %c0_i32 = arith.constant 0 : i32
    %c0_i32_0 = arith.constant 0 : i32
    %c0_i32_1 = arith.constant 0 : i32
    return %c0_i32, %c0_i32_0 : i32, i32
  }
  func.func @transform_13(%arg0: i32) -> (i32, i32) {
    %c0_i32 = arith.constant 0 : i32
    %c0_i32_0 = arith.constant 0 : i32
    %c0_i32_1 = arith.constant 0 : i32
    return %c0_i32, %c0_i32_0 : i32, i32
  }
  func.func @transform_14(%arg0: i32) -> (i32, i32) {
    %c0_i32 = arith.constant 0 : i32
    %c0_i32_0 = arith.constant 0 : i32
    return %arg0, %c0_i32 : i32, i32
  }
}

</mosaic_0001>

<llo_original>
// kernel: chunk_squeezer_forward.1
$region0: #{chunk_squeezer_forward.1}
  #allocation0 [shape = 'u32[]', space=smem, size = 0x4, offset = 0x4, fixed_abs, tag = 'smem constant byte address 0x4 - core index']
  #allocation1 [shape = 'u32[144,128]{1,0:T(1,128)}', space=vmem, size = 0x12000, scoped, tag = 'internal scratch']
  #allocation2 [shape = 'f32[32,16]{1,0:T(8,128)}', space=vmem, size = 0x4000, scoped, tag = 'scratch operand']
  %s0 = inlined_call_operand.vmem [shape: f32[8,50], index: 0, kind: input, shape index: {}]
  %s1 = inlined_call_operand.hbm [shape: f32[4,8], index: 1, kind: input, shape index: {}]
  %s2 = inlined_call_operand.vmem [shape: f32[24,32], index: 2, kind: input, shape index: {}]
  %s3 = inlined_call_operand.vmem [shape: f32[32,32], index: 3, kind: input, shape index: {}]
  %s4 = inlined_call_operand.vmem [shape: f32[32,8], index: 4, kind: input, shape index: {}]
  %s5 = inlined_call_operand.vmem [shape: f32[1,32], index: 5, kind: input, shape index: {}]
  %s6 = inlined_call_operand.vmem [shape: f32[1,32], index: 6, kind: input, shape index: {}]
  %s7 = inlined_call_operand.hbm [shape: f32[1,8], index: 7, kind: input, shape index: {}]
  %s8 = inlined_call_operand.vmem [shape: f32[32,32], index: 8, kind: input, shape index: {}]
  %s9 = inlined_call_operand.vmem [shape: f32[32,32], index: 9, kind: input, shape index: {}]
  %s10 = inlined_call_operand.vmem [shape: f32[32,4], index: 10, kind: input, shape index: {}]
  %s11 = inlined_call_operand.hbm [shape: f32[1,32], index: 11, kind: input, shape index: {}]
  %s12 = inlined_call_operand.hbm [shape: f32[1,32], index: 12, kind: input, shape index: {}]
  %s13 = inlined_call_operand.hbm [shape: f32[1,4], index: 13, kind: input, shape index: {}]
  %s14 = inlined_call_operand.vmem [shape: f32[8,4], index: 14, kind: output, shape index: {}]
  %s15 = sld [smem:[#allocation0]]
  $region86: #{chunk_squeezer_forward.1} parent=0
    _
  %s17 = ssub.s32 1, %s15
  %s18 = scalar_select 0, %s17, %s15
  $region1: #{chunk_squeezer_forward.1} parent=0
    #allocation3 [shape = 'u8[2048]{0}', space=vmem, size = 0x800, scoped, tag = 'input window, operand 1, single buffered']
    #allocation4 [shape = 's32[1]{0}', space=sflag, size = 0x4, scoped, tag = 'scoped memory for chunk_squeezer_forward.1']
    #allocation5 [shape = 'u8[512]{0}', space=vmem, size = 0x400, scoped, tag = 'input window, operand 7, single buffered']
    #allocation6 [shape = 's32[1]{0}', space=sflag, size = 0x4, scoped, tag = 'scoped memory for chunk_squeezer_forward.1']
    #allocation7 [shape = 'u8[512]{0}', space=vmem, size = 0x400, scoped, tag = 'input window, operand 11, single buffered']
    #allocation8 [shape = 'u8[512]{0}', space=vmem, size = 0x400, scoped, tag = 'input window, operand 12, single buffered']
    #allocation9 [shape = 's32[1]{0}', space=sflag, size = 0x4, scoped, tag = 'scoped memory for chunk_squeezer_forward.1']
    #allocation10 [shape = 'u8[512]{0}', space=vmem, size = 0x400, scoped, tag = 'input window, operand 13, single buffered']
    %19 = vsyncpa [#allocation4], 0
    %20 = vsyncpa [#allocation6], 0
    %21 = vsyncpa [#allocation9], 0
    // Predicated region
    $region2: #{chunk_squeezer_forward.1} parent=1 // pred_check
      _
    $region3: #{chunk_squeezer_forward.1} parent=1 // pred_check_branch
      %23 = sbr.rel (0) target = $region5
    $region4: #{chunk_squeezer_forward.1} parent=1 // pred_region
      _
    $region5: #{chunk_squeezer_forward.1} parent=1 // pred_fallthru
      _
    // Predicated region
    $region6: #{chunk_squeezer_forward.1} parent=1 // pred_check
      _
    $region7: #{chunk_squeezer_forward.1} parent=1 // pred_check_branch
      %25 = sbr.rel (0) target = $region9
    $region8: #{chunk_squeezer_forward.1} parent=1 // pred_region
      %s27 = ssub.s32 64, 64
      %28 = vsyncadd [#allocation4], %s27
      %s30 = sshll.u32 [#allocation3], 4
      %s31 = int_to_ptr.vmem [resolvable:$true] %s30
      %33 = dma.hbm_to_vmem [thread:$0]  %s1, 64, %s31, [#allocation4]
    $region9: #{chunk_squeezer_forward.1} parent=1 // pred_fallthru
      _
    // Predicated region
    $region10: #{chunk_squeezer_forward.1} parent=1 // pred_check
      _
    $region11: #{chunk_squeezer_forward.1} parent=1 // pred_check_branch
      %35 = sbr.rel (0) target = $region13
    $region12: #{chunk_squeezer_forward.1} parent=1 // pred_region
      _
    $region13: #{chunk_squeezer_forward.1} parent=1 // pred_fallthru
      _
    // Predicated region
    $region14: #{chunk_squeezer_forward.1} parent=1 // pred_check
      _
    $region15: #{chunk_squeezer_forward.1} parent=1 // pred_check_branch
      %37 = sbr.rel (0) target = $region17
    $region16: #{chunk_squeezer_forward.1} parent=1 // pred_region
      _
    $region17: #{chunk_squeezer_forward.1} parent=1 // pred_fallthru
      _
    // Predicated region
    $region18: #{chunk_squeezer_forward.1} parent=1 // pred_check
      _
    $region19: #{chunk_squeezer_forward.1} parent=1 // pred_check_branch
      %39 = sbr.rel (0) target = $region21
    $region20: #{chunk_squeezer_forward.1} parent=1 // pred_region
      _
    $region21: #{chunk_squeezer_forward.1} parent=1 // pred_fallthru
      _
    // Predicated region
    $region22: #{chunk_squeezer_forward.1} parent=1 // pred_check
      _
    $region23: #{chunk_squeezer_forward.1} parent=1 // pred_check_branch
      %41 = sbr.rel (0) target = $region25
    $region24: #{chunk_squeezer_forward.1} parent=1 // pred_region
      _
    $region25: #{chunk_squeezer_forward.1} parent=1 // pred_fallthru
      _
    // Predicated region
    $region26: #{chunk_squeezer_forward.1} parent=1 // pred_check
      _
    $region27: #{chunk_squeezer_forward.1} parent=1 // pred_check_branch
      %43 = sbr.rel (0) target = $region29
    $region28: #{chunk_squeezer_forward.1} parent=1 // pred_region
      _
    $region29: #{chunk_squeezer_forward.1} parent=1 // pred_fallthru
      _
    // Predicated region
    $region30: #{chunk_squeezer_forward.1} parent=1 // pred_check
      _
    $region31: #{chunk_squeezer_forward.1} parent=1 // pred_check_branch
      %45 = sbr.rel (0) target = $region33
    $region32: #{chunk_squeezer_forward.1} parent=1 // pred_region
      %s47 = ssub.s32 16, 16
      %48 = vsyncadd [#allocation6], %s47
      %s50 = sshll.u32 [#allocation5], 4
      %s51 = int_to_ptr.vmem [resolvable:$true] %s50
      %53 = dma.hbm_to_vmem [thread:$0]  %s7, 16, %s51, [#allocation6]
    $region33: #{chunk_squeezer_forward.1} parent=1 // pred_fallthru
      _
    // Predicated region
    $region34: #{chunk_squeezer_forward.1} parent=1 // pred_check
      _
    $region35: #{chunk_squeezer_forward.1} parent=1 // pred_check_branch
      %55 = sbr.rel (0) target = $region37
    $region36: #{chunk_squeezer_forward.1} parent=1 // pred_region
      _
    $region37: #{chunk_squeezer_forward.1} parent=1 // pred_fallthru
      _
    // Predicated region
    $region38: #{chunk_squeezer_forward.1} parent=1 // pred_check
      _
    $region39: #{chunk_squeezer_forward.1} parent=1 // pred_check_branch
      %57 = sbr.rel (0) target = $region41
    $region40: #{chunk_squeezer_forward.1} parent=1 // pred_region
      _
    $region41: #{chunk_squeezer_forward.1} parent=1 // pred_fallthru
      _
    // Predicated region
    $region42: #{chunk_squeezer_forward.1} parent=1 // pred_check
      _
    $region43: #{chunk_squeezer_forward.1} parent=1 // pred_check_branch
      %59 = sbr.rel (0) target = $region45
    $region44: #{chunk_squeezer_forward.1} parent=1 // pred_region
      _
    $region45: #{chunk_squeezer_forward.1} parent=1 // pred_fallthru
      _
    // Predicated region
    $region46: #{chunk_squeezer_forward.1} parent=1 // pred_check
      _
    $region47: #{chunk_squeezer_forward.1} parent=1 // pred_check_branch
      %61 = sbr.rel (0) target = $region49
    $region48: #{chunk_squeezer_forward.1} parent=1 // pred_region
      %s63 = ssub.s32 16, 16
      %64 = vsyncadd [#allocation6], %s63
      %s66 = sshll.u32 [#allocation7], 4
      %s67 = int_to_ptr.vmem [resolvable:$true] %s66
      %69 = dma.hbm_to_vmem [thread:$0]  %s11, 16, %s67, [#allocation6]
    $region49: #{chunk_squeezer_forward.1} parent=1 // pred_fallthru
      _
    // Predicated region
    $region50: #{chunk_squeezer_forward.1} parent=1 // pred_check
      _
    $region51: #{chunk_squeezer_forward.1} parent=1 // pred_check_branch
      %71 = sbr.rel (0) target = $region53
    $region52: #{chunk_squeezer_forward.1} parent=1 // pred_region
      %s73 = ssub.s32 16, 16
      %74 = vsyncadd [#allocation9], %s73
      %s76 = sshll.u32 [#allocation8], 4
      %s77 = int_to_ptr.vmem [resolvable:$true] %s76
      %79 = dma.hbm_to_vmem [thread:$0]  %s12, 16, %s77, [#allocation9]
    $region53: #{chunk_squeezer_forward.1} parent=1 // pred_fallthru
      _
    // Predicated region
    $region54: #{chunk_squeezer_forward.1} parent=1 // pred_check
      _
    $region55: #{chunk_squeezer_forward.1} parent=1 // pred_check_branch
      %81 = sbr.rel (0) target = $region57
    $region56: #{chunk_squeezer_forward.1} parent=1 // pred_region
      %s83 = ssub.s32 16, 16
      %84 = vsyncadd [#allocation9], %s83
      %s86 = sshll.u32 [#allocation10], 4
      %s87 = int_to_ptr.vmem [resolvable:$true] %s86
      %89 = dma.hbm_to_vmem [thread:$0]  %s13, 16, %s87, [#allocation9]
    $region57: #{chunk_squeezer_forward.1} parent=1 // pred_fallthru
      _
    // Predicated region
    $region58: #{chunk_squeezer_forward.1} parent=1 // pred_check
      _
    $region59: #{chunk_squeezer_forward.1} parent=1 // pred_check_branch
      %91 = sbr.rel (0) target = $region61
    $region60: #{chunk_squeezer_forward.1} parent=1 // pred_region
      %92 = dma.done [#allocation4], 64
    $region61: #{chunk_squeezer_forward.1} parent=1 // pred_fallthru
      _
    // Predicated region
    $region62: #{chunk_squeezer_forward.1} parent=1 // pred_check
      _
    $region63: #{chunk_squeezer_forward.1} parent=1 // pred_check_branch
      %94 = sbr.rel (0) target = $region65
    $region64: #{chunk_squeezer_forward.1} parent=1 // pred_region
      %95 = dma.done [#allocation6], 16
    $region65: #{chunk_squeezer_forward.1} parent=1 // pred_fallthru
      _
    // Predicated region
    $region66: #{chunk_squeezer_forward.1} parent=1 // pred_check
      _
    $region67: #{chunk_squeezer_forward.1} parent=1 // pred_check_branch
      %97 = sbr.rel (0) target = $region69
    $region68: #{chunk_squeezer_forward.1} parent=1 // pred_region
      %98 = dma.done [#allocation6], 16
    $region69: #{chunk_squeezer_forward.1} parent=1 // pred_fallthru
      _
    // Predicated region
    $region70: #{chunk_squeezer_forward.1} parent=1 // pred_check
      _
    $region71: #{chunk_squeezer_forward.1} parent=1 // pred_check_branch
      %100 = sbr.rel (0) target = $region73
    $region72: #{chunk_squeezer_forward.1} parent=1 // pred_region
      %101 = dma.done [#allocation9], 16
    $region73: #{chunk_squeezer_forward.1} parent=1 // pred_fallthru
      _
    // Predicated region
    $region74: #{chunk_squeezer_forward.1} parent=1 // pred_check
      _
    $region75: #{chunk_squeezer_forward.1} parent=1 // pred_check_branch
      %103 = sbr.rel (0) target = $region77
    $region76: #{chunk_squeezer_forward.1} parent=1 // pred_region
      %104 = dma.done [#allocation9], 16
    $region77: #{chunk_squeezer_forward.1} parent=1 // pred_fallthru
      _
    %v105 = vld [vmem:[%s0] sm:$0xff]
    %vm106 = vcmask 130048
    %107 = vst.msk [vmem:[#allocation2] sm:$0xff] %vm106, %v105
    %v108 = vld [vmem:[%s0] sm:$0xff]
    %110 = vrot.lane.b32.xlu0 %v108, 112
    %v111 = vpop.permute.xlu0 %110
    %113 = vst.msk [vmem:[#allocation2 + $0x8] sm:$0xff] %vm106, %v111
    %v114 = vld [vmem:[%s0] sm:$0xff]
    %116 = vrot.lane.b32.xlu0 %v114, 96
    %v117 = vpop.permute.xlu0 %116
    %119 = vst.msk [vmem:[#allocation2 + $0x10] sm:$0xff] %vm106, %v117
    %120 = vst.msk [vmem:[#allocation2 + $0x18] sm:$0xff] %vm106, 0.0
    %v121 = vld [vmem:[%s0] sm:$0xff]
    %123 = vrot.lane.b32.xlu0 %v121, 80
    %v124 = vpop.permute.xlu0 %123
    %vm126 = vcmask 15360
    %127 = vst.msk [vmem:[#allocation2 + $0x18] sm:$0xff] %vm126, %v124
    %v128 = vld [vmem:[%s2] sm:$0xff]
    %v129 = vld [vmem:[%s2 + $0x8] sm:$0xff]
    %v130 = vld [vmem:[%s2 + $0x10] sm:$0xff]
    %v131 = vld [vmem:[%s5] sm:$0x1]
    %v132 = vld [vmem:[#allocation3] sm:$0xf]
    %v134 = vlaneseq
    %v135 = vshrl.u32 %v134, 7
    %v136 = vsub.s32 0, %v135
    %v137 = vrot.slane %v131, %v136
    %vm139 = vcmask 64512
    %v141 = vsel %vm139, %v132, 0
    %143 = vmatprep.subr.mxu0 0.0
    %144 = vmatpush1.msra.mxu0 %v130
    %145 = vmatprep.subr.mxu0 0.0
    %146 = vmatpush1.msra.mxu0 0.0
    %147 = vmatprep.subr.mxu0 0.0
    %148 = vmatpush1.msra.mxu0 0.0
    %149 = vmatprep.subr.mxu0 0.0
    %150 = vmatpush1.msra.mxu0 0.0
    %151 = vmatprep.subr.mxu0 0.0
    %152 = vmatpush1.msra.mxu0 0.0
    %153 = vmatprep.subr.mxu0 0.0
    %154 = vmatpush1.msra.mxu0 0.0
    %155 = vmatprep.subr.mxu0 0.0
    %156 = vmatpush1.msra.mxu0 0.0
    %157 = vmatprep.subr.mxu0 0.0
    %158 = vmatpush1.msra.mxu0 0.0
    %159 = vmatprep.subr.mxu0 0.0
    %160 = vmatpush1.msra.mxu0 0.0
    %161 = vmatprep.subr.mxu0 0.0
    %162 = vmatpush1.msra.mxu0 0.0
    %163 = vmatprep.subr.mxu0 0.0
    %164 = vmatpush1.msra.mxu0 0.0
    %165 = vmatprep.subr.mxu0 0.0
    %166 = vmatpush1.msra.mxu0 0.0
    %167 = vmatprep.subr.mxu0 0.0
    %168 = vmatpush1.msra.mxu0 0.0
    %169 = vmatprep.subr.mxu0 0.0
    %170 = vmatpush1.msra.mxu0 0.0
    %171 = vmatprep.subr.mxu0 0.0
    %172 = vmatpush1.msra.mxu0 0.0
    %173 = vmatprep.subr.mxu0 0.0
    %174 = vmatpush1.msra.mxu0 0.0
    %175 = vmatprep.subr.mxu0 0.0
    %176 = vmatpush1.msra.mxu0 0.0
    %177 = vmatprep.subr.mxu0 0.0
    %178 = vmatpush1.msra.mxu0 0.0
    %179 = vmatprep.subr.mxu0 0.0
    %180 = vmatpush1.msra.mxu0 0.0
    %181 = vmatprep.subr.mxu0 0.0
    %182 = vmatpush1.msra.mxu0 0.0
    %183 = vmatprep.subr.mxu0 0.0
    %184 = vmatpush1.msra.mxu0 0.0
    %185 = vmatprep.subr.mxu0 0.0
    %186 = vmatpush1.msra.mxu0 0.0
    %187 = vmatprep.subr.mxu0 0.0
    %188 = vmatpush1.msra.mxu0 0.0
    %189 = vmatprep.subr.mxu0 0.0
    %190 = vmatpush1.msra.mxu0 0.0
    %191 = vmatprep.subr.mxu0 0.0
    %192 = vmatpush1.msra.mxu0 0.0
    %193 = vmatprep.subr.mxu0 0.0
    %194 = vmatpush1.msra.mxu0 0.0
    %195 = vmatprep.subr.mxu0 0.0
    %196 = vmatpush1.msra.mxu0 0.0
    %197 = vmatprep.subr.mxu0 0.0
    %198 = vmatpush1.msra.mxu0 0.0
    %199 = vmatprep.subr.mxu0 0.0
    %200 = vmatpush1.msra.mxu0 0.0
    %201 = vmatprep.subr.mxu0 0.0
    %202 = vmatpush1.msra.mxu0 0.0
    %203 = vmatprep.subr.mxu0 0.0
    %204 = vmatpush1.msra.mxu0 0.0
    %205 = vmatprep.subr.mxu0 0.0
    %206 = vmatpush1.msra.mxu0 0.0
    %207 = vmatprep.mubr.f32.mxu0 0.0
    %208 = vmatmul.mubr.f32.gmra.mrb[0].mxu0 %v141
    %v209 = vpop.f32.mrb[0].mxu0
    %v210 = vadd.f32 %v137, %v209
    %v211 = vpop.f32.mrb[0].mxu0
    %212 = vdwg.mxu0
    %v213 = vlaneseq
    %v214 = vshrl.u32 %v213, 7
    %v215 = vadd.s32 %v214, 8
    %v216 = vadd.s32 %v214, 16
    %v217 = vadd.s32 %v214, 24
    %v218 = vlaneseq
    %v219 = vand.u32 %v218, 127
    %v220 = vmul.u32 %v219, 8
    %vm221 = vcmp.ge.s32.totalorder %v214, %v220
    %vm222 = vcmp.ge.s32.totalorder %v215, %v220
    %vm223 = vcmp.ge.s32.totalorder %v216, %v220
    %vm224 = vcmp.ge.s32.totalorder %v217, %v220
    %v225 = vadd.s32 %v220, 8
    %vm226 = vcmp.lt.s32.totalorder %v214, %v225
    %vm227 = vcmp.lt.s32.totalorder %v215, %v225
    %vm228 = vcmp.lt.s32.totalorder %v216, %v225
    %vm229 = vcmp.lt.s32.totalorder %v217, %v225
    %vm230 = vmand %vm221, %vm226
    %vm231 = vmand %vm222, %vm227
    %vm232 = vmand %vm223, %vm228
    %vm233 = vmand %vm224, %vm229
    %v234 = vsel %vm230, 1, 0
    %v235 = vsel %vm231, 1, 0
    %v236 = vsel %vm232, 1, 0
    %v237 = vsel %vm233, 1, 0
    %v238 = vcvt.s32.f32 %v234
    %v239 = vcvt.s32.f32 %v235
    %v240 = vcvt.s32.f32 %v236
    %v241 = vcvt.s32.f32 %v237
    %v242 = vld [vmem:[#allocation2] sm:$0xff]
    %v243 = vld [vmem:[#allocation2 + $0x8] sm:$0xff]
    %v244 = vld [vmem:[#allocation2 + $0x10] sm:$0xff]
    %v245 = vld [vmem:[#allocation2 + $0x18] sm:$0xff]
    %vm246 = vcmask 31744
    %v248 = vsel %vm246, %v238, 0
    %v251 = vsel %vm246, %v239, 0
    %v254 = vsel %vm246, %v240, 0
    %v257 = vsel %vm246, %v241, 0
    %vm259 = vcmask 1043456
    %v261 = vsel %vm259, %v210, 0
    %263 = vmatprep.subr.mxu0 0.0
    %264 = vmatpush1.msra.mxu0 %v261
    %265 = vmatprep.subr.mxu0 0.0
    %266 = vmatpush1.msra.mxu0 0.0
    %267 = vmatprep.subr.mxu0 0.0
    %268 = vmatpush1.msra.mxu0 0.0
    %269 = vmatprep.subr.mxu0 0.0
    %270 = vmatpush1.msra.mxu0 0.0
    %271 = vmatprep.subr.mxu0 0.0
    %272 = vmatpush1.msra.mxu0 0.0
    %273 = vmatprep.subr.mxu0 0.0
    %274 = vmatpush1.msra.mxu0 0.0
    %275 = vmatprep.subr.mxu0 0.0
    %276 = vmatpush1.msra.mxu0 0.0
    %277 = vmatprep.subr.mxu0 0.0
    %278 = vmatpush1.msra.mxu0 0.0
    %279 = vmatprep.subr.mxu0 0.0
    %280 = vmatpush1.msra.mxu0 0.0
    %281 = vmatprep.subr.mxu0 0.0
    %282 = vmatpush1.msra.mxu0 0.0
    %283 = vmatprep.subr.mxu0 0.0
    %284 = vmatpush1.msra.mxu0 0.0
    %285 = vmatprep.subr.mxu0 0.0
    %286 = vmatpush1.msra.mxu0 0.0
    %287 = vmatprep.subr.mxu0 0.0
    %288 = vmatpush1.msra.mxu0 0.0
    %289 = vmatprep.subr.mxu0 0.0
    %290 = vmatpush1.msra.mxu0 0.0
    %291 = vmatprep.subr.mxu0 0.0
    %292 = vmatpush1.msra.mxu0 0.0
    %293 = vmatprep.subr.mxu0 0.0
    %294 = vmatpush1.msra.mxu0 0.0
    %295 = vmatprep.subr.mxu0 0.0
    %296 = vmatpush1.msra.mxu0 0.0
    %297 = vmatprep.subr.mxu0 0.0
    %298 = vmatpush1.msra.mxu0 0.0
    %299 = vmatprep.subr.mxu0 0.0
    %300 = vmatpush1.msra.mxu0 0.0
    %301 = vmatprep.subr.mxu0 0.0
    %302 = vmatpush1.msra.mxu0 0.0
    %303 = vmatprep.subr.mxu0 0.0
    %304 = vmatpush1.msra.mxu0 0.0
    %305 = vmatprep.subr.mxu0 0.0
    %306 = vmatpush1.msra.mxu0 0.0
    %307 = vmatprep.subr.mxu0 0.0
    %308 = vmatpush1.msra.mxu0 0.0
    %309 = vmatprep.subr.mxu0 0.0
    %310 = vmatpush1.msra.mxu0 0.0
    %311 = vmatprep.subr.mxu0 0.0
    %312 = vmatpush1.msra.mxu0 0.0
    %313 = vmatprep.subr.mxu0 0.0
    %314 = vmatpush1.msra.mxu0 0.0
    %315 = vmatprep.subr.mxu0 0.0
    %316 = vmatpush1.msra.mxu0 0.0
    %317 = vmatprep.subr.mxu0 0.0
    %318 = vmatpush1.msra.mxu0 0.0
    %319 = vmatprep.subr.mxu0 0.0
    %320 = vmatpush1.msra.mxu0 0.0
    %321 = vmatprep.subr.mxu0 0.0
    %322 = vmatpush1.msra.mxu0 0.0
    %323 = vmatprep.subr.mxu0 0.0
    %324 = vmatpush1.msra.mxu0 0.0
    %325 = vmatprep.subr.mxu0 0.0
    %326 = vmatpush1.msra.mxu0 0.0
    %327 = vmatprep.mubr.f32.mxu0 0.0
    %328 = vmatmul.mubr.f32.gmra.mrb[0].mxu0 %v248
    %v329 = vpop.f32.mrb[0].mxu0
    %v330 = vadd.f32 0.0, %v329
    %v331 = vpop.f32.mrb[0].mxu0
    %332 = vmatprep.mubr.f32.mxu0 0.0
    %333 = vmatmul.mubr.f32.gmra.mrb[0].mxu0 %v251
    %v334 = vpop.f32.mrb[0].mxu0
    %v335 = vadd.f32 0.0, %v334
    %v336 = vpop.f32.mrb[0].mxu0
    %337 = vmatprep.mubr.f32.mxu0 0.0
    %338 = vmatmul.mubr.f32.gmra.mrb[0].mxu0 %v254
    %v339 = vpop.f32.mrb[0].mxu0
    %v340 = vadd.f32 0.0, %v339
    %v341 = vpop.f32.mrb[0].mxu0
    %342 = vmatprep.mubr.f32.mxu0 0.0
    %343 = vmatmul.mubr.f32.gmra.mrb[0].mxu0 %v257
    %v344 = vpop.f32.mrb[0].mxu0
    %v345 = vadd.f32 0.0, %v344
    %v346 = vpop.f32.mrb[0].mxu0
    %347 = vdwg.mxu0
    %v349 = vsel %vm106, %v242, 0
    %v352 = vsel %vm106, %v243, 0
    %v355 = vsel %vm106, %v244, 0
    %v358 = vsel %vm106, %v245, 0
    %360 = vmatprep.subr.mxu0 0.0
    %361 = vmatpush1.msra.mxu0 %v128
    %362 = vmatprep.subr.mxu0 0.0
    %363 = vmatpush1.msra.mxu0 %v129
    %364 = vmatprep.subr.mxu0 0.0
    %365 = vmatpush1.msra.mxu0 0.0
    %366 = vmatprep.subr.mxu0 0.0
    %367 = vmatpush1.msra.mxu0 0.0
    %368 = vmatprep.subr.mxu0 0.0
    %369 = vmatpush1.msra.mxu0 0.0
    %370 = vmatprep.subr.mxu0 0.0
    %371 = vmatpush1.msra.mxu0 0.0
    %372 = vmatprep.subr.mxu0 0.0
    %373 = vmatpush1.msra.mxu0 0.0
    %374 = vmatprep.subr.mxu0 0.0
    %375 = vmatpush1.msra.mxu0 0.0
    %376 = vmatprep.subr.mxu0 0.0
    %377 = vmatpush1.msra.mxu0 0.0
    %378 = vmatprep.subr.mxu0 0.0
    %379 = vmatpush1.msra.mxu0 0.0
    %380 = vmatprep.subr.mxu0 0.0
    %381 = vmatpush1.msra.mxu0 0.0
    %382 = vmatprep.subr.mxu0 0.0
    %383 = vmatpush1.msra.mxu0 0.0
    %384 = vmatprep.subr.mxu0 0.0
    %385 = vmatpush1.msra.mxu0 0.0
    %386 = vmatprep.subr.mxu0 0.0
    %387 = vmatpush1.msra.mxu0 0.0
    %388 = vmatprep.subr.mxu0 0.0
    %389 = vmatpush1.msra.mxu0 0.0
    %390 = vmatprep.subr.mxu0 0.0
    %391 = vmatpush1.msra.mxu0 0.0
    %392 = vmatprep.subr.mxu0 0.0
    %393 = vmatpush1.msra.mxu0 0.0
    %394 = vmatprep.subr.mxu0 0.0
    %395 = vmatpush1.msra.mxu0 0.0
    %396 = vmatprep.subr.mxu0 0.0
    %397 = vmatpush1.msra.mxu0 0.0
    %398 = vmatprep.subr.mxu0 0.0
    %399 = vmatpush1.msra.mxu0 0.0
    %400 = vmatprep.subr.mxu0 0.0
    %401 = vmatpush1.msra.mxu0 0.0
    %402 = vmatprep.subr.mxu0 0.0
    %403 = vmatpush1.msra.mxu0 0.0
    %404 = vmatprep.subr.mxu0 0.0
    %405 = vmatpush1.msra.mxu0 0.0
    %406 = vmatprep.subr.mxu0 0.0
    %407 = vmatpush1.msra.mxu0 0.0
    %408 = vmatprep.subr.mxu0 0.0
    %409 = vmatpush1.msra.mxu0 0.0
    %410 = vmatprep.subr.mxu0 0.0
    %411 = vmatpush1.msra.mxu0 0.0
    %412 = vmatprep.subr.mxu0 0.0
    %413 = vmatpush1.msra.mxu0 0.0
    %414 = vmatprep.subr.mxu0 0.0
    %415 = vmatpush1.msra.mxu0 0.0
    %416 = vmatprep.subr.mxu0 0.0
    %417 = vmatpush1.msra.mxu0 0.0
    %418 = vmatprep.subr.mxu0 0.0
    %419 = vmatpush1.msra.mxu0 0.0
    %420 = vmatprep.subr.mxu0 0.0
    %421 = vmatpush1.msra.mxu0 0.0
    %422 = vmatprep.subr.mxu0 0.0
    %423 = vmatpush1.msra.mxu0 0.0
    %424 = vmatprep.mubr.f32.mxu0 0.0
    %425 = vmatmul.mubr.f32.gmra.mrb[0].mxu0 %v349
    %v426 = vpop.f32.mrb[0].mxu0
    %v427 = vadd.f32 %v330, %v426
    %v428 = vpop.f32.mrb[0].mxu0
    %429 = vmatprep.mubr.f32.mxu0 0.0
    %430 = vmatmul.mubr.f32.gmra.mrb[0].mxu0 %v352
    %v431 = vpop.f32.mrb[0].mxu0
    %v432 = vadd.f32 %v335, %v431
    %v433 = vpop.f32.mrb[0].mxu0
    %434 = vmatprep.mubr.f32.mxu0 0.0
    %435 = vmatmul.mubr.f32.gmra.mrb[0].mxu0 %v355
    %v436 = vpop.f32.mrb[0].mxu0
    %v437 = vadd.f32 %v340, %v436
    %v438 = vpop.f32.mrb[0].mxu0
    %439 = vmatprep.mubr.f32.mxu0 0.0
    %440 = vmatmul.mubr.f32.gmra.mrb[0].mxu0 %v358
    %v441 = vpop.f32.mrb[0].mxu0
    %v442 = vadd.f32 %v345, %v441
    %v443 = vpop.f32.mrb[0].mxu0
    %444 = vdwg.mxu0
    %v445 = vmax.f32 %v427, 0.0
    %v446 = vmax.f32 %v432, 0.0
    %v447 = vmax.f32 %v437, 0.0
    %v448 = vmax.f32 %v442, 0.0
    %v449 = vld [vmem:[%s3] sm:$0xff]
    %v450 = vld [vmem:[%s3 + $0x8] sm:$0xff]
    %v451 = vld [vmem:[%s3 + $0x10] sm:$0xff]
    %v452 = vld [vmem:[%s3 + $0x18] sm:$0xff]
    %v453 = vld [vmem:[%s6] sm:$0x1]
    %v455 = vlaneseq
    %v456 = vshrl.u32 %v455, 7
    %v457 = vsub.s32 0, %v456
    %v458 = vrot.slane %v453, %v457
    %vm460 = vcmask 261120
    %v462 = vsel %vm460, %v445, 0
    %v465 = vsel %vm460, %v446, 0
    %v468 = vsel %vm460, %v447, 0
    %v471 = vsel %vm460, %v448, 0
    %473 = vmatprep.subr.mxu0 0.0
    %474 = vmatpush1.msra.mxu0 %v449
    %475 = vmatprep.subr.mxu0 0.0
    %476 = vmatpush1.msra.mxu0 %v450
    %477 = vmatprep.subr.mxu0 0.0
    %478 = vmatpush1.msra.mxu0 %v451
    %479 = vmatprep.subr.mxu0 0.0
    %480 = vmatpush1.msra.mxu0 %v452
    %481 = vmatprep.subr.mxu0 0.0
    %482 = vmatpush1.msra.mxu0 0.0
    %483 = vmatprep.subr.mxu0 0.0
    %484 = vmatpush1.msra.mxu0 0.0
    %485 = vmatprep.subr.mxu0 0.0
    %486 = vmatpush1.msra.mxu0 0.0
    %487 = vmatprep.subr.mxu0 0.0
    %488 = vmatpush1.msra.mxu0 0.0
    %489 = vmatprep.subr.mxu0 0.0
    %490 = vmatpush1.msra.mxu0 0.0
    %491 = vmatprep.subr.mxu0 0.0
    %492 = vmatpush1.msra.mxu0 0.0
    %493 = vmatprep.subr.mxu0 0.0
    %494 = vmatpush1.msra.mxu0 0.0
    %495 = vmatprep.subr.mxu0 0.0
    %496 = vmatpush1.msra.mxu0 0.0
    %497 = vmatprep.subr.mxu0 0.0
    %498 = vmatpush1.msra.mxu0 0.0
    %499 = vmatprep.subr.mxu0 0.0
    %500 = vmatpush1.msra.mxu0 0.0
    %501 = vmatprep.subr.mxu0 0.0
    %502 = vmatpush1.msra.mxu0 0.0
    %503 = vmatprep.subr.mxu0 0.0
    %504 = vmatpush1.msra.mxu0 0.0
    %505 = vmatprep.subr.mxu0 0.0
    %506 = vmatpush1.msra.mxu0 0.0
    %507 = vmatprep.subr.mxu0 0.0
    %508 = vmatpush1.msra.mxu0 0.0
    %509 = vmatprep.subr.mxu0 0.0
    %510 = vmatpush1.msra.mxu0 0.0
    %511 = vmatprep.subr.mxu0 0.0
    %512 = vmatpush1.msra.mxu0 0.0
    %513 = vmatprep.subr.mxu0 0.0
    %514 = vmatpush1.msra.mxu0 0.0
    %515 = vmatprep.subr.mxu0 0.0
    %516 = vmatpush1.msra.mxu0 0.0
    %517 = vmatprep.subr.mxu0 0.0
    %518 = vmatpush1.msra.mxu0 0.0
    %519 = vmatprep.subr.mxu0 0.0
    %520 = vmatpush1.msra.mxu0 0.0
    %521 = vmatprep.subr.mxu0 0.0
    %522 = vmatpush1.msra.mxu0 0.0
    %523 = vmatprep.subr.mxu0 0.0
    %524 = vmatpush1.msra.mxu0 0.0
    %525 = vmatprep.subr.mxu0 0.0
    %526 = vmatpush1.msra.mxu0 0.0
    %527 = vmatprep.subr.mxu0 0.0
    %528 = vmatpush1.msra.mxu0 0.0
    %529 = vmatprep.subr.mxu0 0.0
    %530 = vmatpush1.msra.mxu0 0.0
    %531 = vmatprep.subr.mxu0 0.0
    %532 = vmatpush1.msra.mxu0 0.0
    %533 = vmatprep.subr.mxu0 0.0
    %534 = vmatpush1.msra.mxu0 0.0
    %535 = vmatprep.subr.mxu0 0.0
    %536 = vmatpush1.msra.mxu0 0.0
    %537 = vmatprep.mubr.f32.mxu0 0.0
    %538 = vmatmul.mubr.f32.gmra.mrb[0].mxu0 %v462
    %v539 = vpop.f32.mrb[0].mxu0
    %v540 = vadd.f32 %v458, %v539
    %v541 = vpop.f32.mrb[0].mxu0
    %542 = vmatprep.mubr.f32.mxu0 0.0
    %543 = vmatmul.mubr.f32.gmra.mrb[0].mxu0 %v465
    %v544 = vpop.f32.mrb[0].mxu0
    %v545 = vadd.f32 %v458, %v544
    %v546 = vpop.f32.mrb[0].mxu0
    %547 = vmatprep.mubr.f32.mxu0 0.0
    %548 = vmatmul.mubr.f32.gmra.mrb[0].mxu0 %v468
    %v549 = vpop.f32.mrb[0].mxu0
    %v550 = vadd.f32 %v458, %v549
    %v551 = vpop.f32.mrb[0].mxu0
    %552 = vmatprep.mubr.f32.mxu0 0.0
    %553 = vmatmul.mubr.f32.gmra.mrb[0].mxu0 %v471
    %v554 = vpop.f32.mrb[0].mxu0
    %v555 = vadd.f32 %v458, %v554
    %v556 = vpop.f32.mrb[0].mxu0
    %557 = vdwg.mxu0
    %v558 = vmax.f32 %v540, 0.0
    %v559 = vmax.f32 %v545, 0.0
    %v560 = vmax.f32 %v550, 0.0
    %v561 = vmax.f32 %v555, 0.0
    %v562 = vld [vmem:[%s4] sm:$0xff]
    %v563 = vld [vmem:[%s4 + $0x8] sm:$0xff]
    %v564 = vld [vmem:[%s4 + $0x10] sm:$0xff]
    %v565 = vld [vmem:[%s4 + $0x18] sm:$0xff]
    %v566 = vld [vmem:[#allocation5] sm:$0x1]
    %v568 = vlaneseq
    %v569 = vshrl.u32 %v568, 7
    %v570 = vsub.s32 0, %v569
    %v571 = vrot.slane %v566, %v570
    %v574 = vsel %vm460, %v558, 0
    %v577 = vsel %vm460, %v559, 0
    %v580 = vsel %vm460, %v560, 0
    %v583 = vsel %vm460, %v561, 0
    %585 = vmatprep.subr.mxu0 0.0
    %586 = vmatpush1.msra.mxu0 %v562
    %587 = vmatprep.subr.mxu0 0.0
    %588 = vmatpush1.msra.mxu0 %v563
    %589 = vmatprep.subr.mxu0 0.0
    %590 = vmatpush1.msra.mxu0 %v564
    %591 = vmatprep.subr.mxu0 0.0
    %592 = vmatpush1.msra.mxu0 %v565
    %593 = vmatprep.subr.mxu0 0.0
    %594 = vmatpush1.msra.mxu0 0.0
    %595 = vmatprep.subr.mxu0 0.0
    %596 = vmatpush1.msra.mxu0 0.0
    %597 = vmatprep.subr.mxu0 0.0
    %598 = vmatpush1.msra.mxu0 0.0
    %599 = vmatprep.subr.mxu0 0.0
    %600 = vmatpush1.msra.mxu0 0.0
    %601 = vmatprep.subr.mxu0 0.0
    %602 = vmatpush1.msra.mxu0 0.0
    %603 = vmatprep.subr.mxu0 0.0
    %604 = vmatpush1.msra.mxu0 0.0
    %605 = vmatprep.subr.mxu0 0.0
    %606 = vmatpush1.msra.mxu0 0.0
    %607 = vmatprep.subr.mxu0 0.0
    %608 = vmatpush1.msra.mxu0 0.0
    %609 = vmatprep.subr.mxu0 0.0
    %610 = vmatpush1.msra.mxu0 0.0
    %611 = vmatprep.subr.mxu0 0.0
    %612 = vmatpush1.msra.mxu0 0.0
    %613 = vmatprep.subr.mxu0 0.0
    %614 = vmatpush1.msra.mxu0 0.0
    %615 = vmatprep.subr.mxu0 0.0
    %616 = vmatpush1.msra.mxu0 0.0
    %617 = vmatprep.subr.mxu0 0.0
    %618 = vmatpush1.msra.mxu0 0.0
    %619 = vmatprep.subr.mxu0 0.0
    %620 = vmatpush1.msra.mxu0 0.0
    %621 = vmatprep.subr.mxu0 0.0
    %622 = vmatpush1.msra.mxu0 0.0
    %623 = vmatprep.subr.mxu0 0.0
    %624 = vmatpush1.msra.mxu0 0.0
    %625 = vmatprep.subr.mxu0 0.0
    %626 = vmatpush1.msra.mxu0 0.0
    %627 = vmatprep.subr.mxu0 0.0
    %628 = vmatpush1.msra.mxu0 0.0
    %629 = vmatprep.subr.mxu0 0.0
    %630 = vmatpush1.msra.mxu0 0.0
    %631 = vmatprep.subr.mxu0 0.0
    %632 = vmatpush1.msra.mxu0 0.0
    %633 = vmatprep.subr.mxu0 0.0
    %634 = vmatpush1.msra.mxu0 0.0
    %635 = vmatprep.subr.mxu0 0.0
    %636 = vmatpush1.msra.mxu0 0.0
    %637 = vmatprep.subr.mxu0 0.0
    %638 = vmatpush1.msra.mxu0 0.0
    %639 = vmatprep.subr.mxu0 0.0
    %640 = vmatpush1.msra.mxu0 0.0
    %641 = vmatprep.subr.mxu0 0.0
    %642 = vmatpush1.msra.mxu0 0.0
    %643 = vmatprep.subr.mxu0 0.0
    %644 = vmatpush1.msra.mxu0 0.0
    %645 = vmatprep.subr.mxu0 0.0
    %646 = vmatpush1.msra.mxu0 0.0
    %647 = vmatprep.subr.mxu0 0.0
    %648 = vmatpush1.msra.mxu0 0.0
    %649 = vmatprep.mubr.f32.mxu0 0.0
    %650 = vmatmul.mubr.f32.gmra.mrb[0].mxu0 %v574
    %v651 = vpop.f32.mrb[0].mxu0
    %v652 = vadd.f32 %v571, %v651
    %v653 = vpop.f32.mrb[0].mxu0
    %654 = vmatprep.mubr.f32.mxu0 0.0
    %655 = vmatmul.mubr.f32.gmra.mrb[0].mxu0 %v577
    %v656 = vpop.f32.mrb[0].mxu0
    %v657 = vadd.f32 %v571, %v656
    %v658 = vpop.f32.mrb[0].mxu0
    %659 = vmatprep.mubr.f32.mxu0 0.0
    %660 = vmatmul.mubr.f32.gmra.mrb[0].mxu0 %v580
    %v661 = vpop.f32.mrb[0].mxu0
    %v662 = vadd.f32 %v571, %v661
    %v663 = vpop.f32.mrb[0].mxu0
    %664 = vmatprep.mubr.f32.mxu0 0.0
    %665 = vmatmul.mubr.f32.gmra.mrb[0].mxu0 %v583
    %v666 = vpop.f32.mrb[0].mxu0
    %v667 = vadd.f32 %v571, %v666
    %v668 = vpop.f32.mrb[0].mxu0
    %669 = vdwg.mxu0
    %v670 = vld [vmem:[#allocation7] sm:$0x1]
    %v671 = vld [vmem:[%s8] sm:$0xff]
    %v673 = vsel %vm139, %v652, 0
    %675 = vmatprep.subr.mxu0 0.0
    %676 = vmatpush1.msra.mxu0 %v671
    %677 = vmatprep.subr.mxu0 0.0
    %678 = vmatpush1.msra.mxu0 0.0
    %679 = vmatprep.subr.mxu0 0.0
    %680 = vmatpush1.msra.mxu0 0.0
    %681 = vmatprep.subr.mxu0 0.0
    %682 = vmatpush1.msra.mxu0 0.0
    %683 = vmatprep.subr.mxu0 0.0
    %684 = vmatpush1.msra.mxu0 0.0
    %685 = vmatprep.subr.mxu0 0.0
    %686 = vmatpush1.msra.mxu0 0.0
    %687 = vmatprep.subr.mxu0 0.0
    %688 = vmatpush1.msra.mxu0 0.0
    %689 = vmatprep.subr.mxu0 0.0
    %690 = vmatpush1.msra.mxu0 0.0
    %691 = vmatprep.subr.mxu0 0.0
    %692 = vmatpush1.msra.mxu0 0.0
    %693 = vmatprep.subr.mxu0 0.0
    %694 = vmatpush1.msra.mxu0 0.0
    %695 = vmatprep.subr.mxu0 0.0
    %696 = vmatpush1.msra.mxu0 0.0
    %697 = vmatprep.subr.mxu0 0.0
    %698 = vmatpush1.msra.mxu0 0.0
    %699 = vmatprep.subr.mxu0 0.0
    %700 = vmatpush1.msra.mxu0 0.0
    %701 = vmatprep.subr.mxu0 0.0
    %702 = vmatpush1.msra.mxu0 0.0
    %703 = vmatprep.subr.mxu0 0.0
    %704 = vmatpush1.msra.mxu0 0.0
    %705 = vmatprep.subr.mxu0 0.0
    %706 = vmatpush1.msra.mxu0 0.0
    %707 = vmatprep.subr.mxu0 0.0
    %708 = vmatpush1.msra.mxu0 0.0
    %709 = vmatprep.subr.mxu0 0.0
    %710 = vmatpush1.msra.mxu0 0.0
    %711 = vmatprep.subr.mxu0 0.0
    %712 = vmatpush1.msra.mxu0 0.0
    %713 = vmatprep.subr.mxu0 0.0
    %714 = vmatpush1.msra.mxu0 0.0
    %715 = vmatprep.subr.mxu0 0.0
    %716 = vmatpush1.msra.mxu0 0.0
    %717 = vmatprep.subr.mxu0 0.0
    %718 = vmatpush1.msra.mxu0 0.0
    %719 = vmatprep.subr.mxu0 0.0
    %720 = vmatpush1.msra.mxu0 0.0
    %721 = vmatprep.subr.mxu0 0.0
    %722 = vmatpush1.msra.mxu0 0.0
    %723 = vmatprep.subr.mxu0 0.0
    %724 = vmatpush1.msra.mxu0 0.0
    %725 = vmatprep.subr.mxu0 0.0
    %726 = vmatpush1.msra.mxu0 0.0
    %727 = vmatprep.subr.mxu0 0.0
    %728 = vmatpush1.msra.mxu0 0.0
    %729 = vmatprep.subr.mxu0 0.0
    %730 = vmatpush1.msra.mxu0 0.0
    %731 = vmatprep.subr.mxu0 0.0
    %732 = vmatpush1.msra.mxu0 0.0
    %733 = vmatprep.subr.mxu0 0.0
    %734 = vmatpush1.msra.mxu0 0.0
    %735 = vmatprep.subr.mxu0 0.0
    %736 = vmatpush1.msra.mxu0 0.0
    %737 = vmatprep.subr.mxu0 0.0
    %738 = vmatpush1.msra.mxu0 0.0
    %739 = vmatprep.mubr.f32.mxu0 0.0
    %740 = vmatmul.mubr.f32.gmra.mrb[0].mxu0 %v673
    %v741 = vpop.f32.mrb[0].mxu0
    %v742 = vadd.f32 0.0, %v741
    %v743 = vpop.f32.mrb[0].mxu0
    %744 = vdwg.mxu0
    %v746 = vlaneseq
    %v747 = vshrl.u32 %v746, 7
    %v748 = vsub.s32 0, %v747
    %v749 = vrot.slane %v670, %v748
    %v751 = vadd.f32 %v749, %v742
    %v752 = vld [vmem:[%s8 + $0x8] sm:$0xff]
    %v754 = vsel %vm139, %v657, 0
    %756 = vmatprep.subr.mxu0 0.0
    %757 = vmatpush1.msra.mxu0 %v752
    %758 = vmatprep.subr.mxu0 0.0
    %759 = vmatpush1.msra.mxu0 0.0
    %760 = vmatprep.subr.mxu0 0.0
    %761 = vmatpush1.msra.mxu0 0.0
    %762 = vmatprep.subr.mxu0 0.0
    %763 = vmatpush1.msra.mxu0 0.0
    %764 = vmatprep.subr.mxu0 0.0
    %765 = vmatpush1.msra.mxu0 0.0
    %766 = vmatprep.subr.mxu0 0.0
    %767 = vmatpush1.msra.mxu0 0.0
    %768 = vmatprep.subr.mxu0 0.0
    %769 = vmatpush1.msra.mxu0 0.0
    %770 = vmatprep.subr.mxu0 0.0
    %771 = vmatpush1.msra.mxu0 0.0
    %772 = vmatprep.subr.mxu0 0.0
    %773 = vmatpush1.msra.mxu0 0.0
    %774 = vmatprep.subr.mxu0 0.0
    %775 = vmatpush1.msra.mxu0 0.0
    %776 = vmatprep.subr.mxu0 0.0
    %777 = vmatpush1.msra.mxu0 0.0
    %778 = vmatprep.subr.mxu0 0.0
    %779 = vmatpush1.msra.mxu0 0.0
    %780 = vmatprep.subr.mxu0 0.0
    %781 = vmatpush1.msra.mxu0 0.0
    %782 = vmatprep.subr.mxu0 0.0
    %783 = vmatpush1.msra.mxu0 0.0
    %784 = vmatprep.subr.mxu0 0.0
    %785 = vmatpush1.msra.mxu0 0.0
    %786 = vmatprep.subr.mxu0 0.0
    %787 = vmatpush1.msra.mxu0 0.0
    %788 = vmatprep.subr.mxu0 0.0
    %789 = vmatpush1.msra.mxu0 0.0
    %790 = vmatprep.subr.mxu0 0.0
    %791 = vmatpush1.msra.mxu0 0.0
    %792 = vmatprep.subr.mxu0 0.0
    %793 = vmatpush1.msra.mxu0 0.0
    %794 = vmatprep.subr.mxu0 0.0
    %795 = vmatpush1.msra.mxu0 0.0
    %796 = vmatprep.subr.mxu0 0.0
    %797 = vmatpush1.msra.mxu0 0.0
    %798 = vmatprep.subr.mxu0 0.0
    %799 = vmatpush1.msra.mxu0 0.0
    %800 = vmatprep.subr.mxu0 0.0
    %801 = vmatpush1.msra.mxu0 0.0
    %802 = vmatprep.subr.mxu0 0.0
    %803 = vmatpush1.msra.mxu0 0.0
    %804 = vmatprep.subr.mxu0 0.0
    %805 = vmatpush1.msra.mxu0 0.0
    %806 = vmatprep.subr.mxu0 0.0
    %807 = vmatpush1.msra.mxu0 0.0
    %808 = vmatprep.subr.mxu0 0.0
    %809 = vmatpush1.msra.mxu0 0.0
    %810 = vmatprep.subr.mxu0 0.0
    %811 = vmatpush1.msra.mxu0 0.0
    %812 = vmatprep.subr.mxu0 0.0
    %813 = vmatpush1.msra.mxu0 0.0
    %814 = vmatprep.subr.mxu0 0.0
    %815 = vmatpush1.msra.mxu0 0.0
    %816 = vmatprep.subr.mxu0 0.0
    %817 = vmatpush1.msra.mxu0 0.0
    %818 = vmatprep.subr.mxu0 0.0
    %819 = vmatpush1.msra.mxu0 0.0
    %820 = vmatprep.mubr.f32.mxu0 0.0
    %821 = vmatmul.mubr.f32.gmra.mrb[0].mxu0 %v754
    %v822 = vpop.f32.mrb[0].mxu0
    %v823 = vadd.f32 0.0, %v822
    %v824 = vpop.f32.mrb[0].mxu0
    %825 = vdwg.mxu0
    %v826 = vadd.f32 %v751, %v823
    %v827 = vld [vmem:[%s8 + $0x10] sm:$0xff]
    %v829 = vsel %vm139, %v662, 0
    %831 = vmatprep.subr.mxu0 0.0
    %832 = vmatpush1.msra.mxu0 %v827
    %833 = vmatprep.subr.mxu0 0.0
    %834 = vmatpush1.msra.mxu0 0.0
    %835 = vmatprep.subr.mxu0 0.0
    %836 = vmatpush1.msra.mxu0 0.0
    %837 = vmatprep.subr.mxu0 0.0
    %838 = vmatpush1.msra.mxu0 0.0
    %839 = vmatprep.subr.mxu0 0.0
    %840 = vmatpush1.msra.mxu0 0.0
    %841 = vmatprep.subr.mxu0 0.0
    %842 = vmatpush1.msra.mxu0 0.0
    %843 = vmatprep.subr.mxu0 0.0
    %844 = vmatpush1.msra.mxu0 0.0
    %845 = vmatprep.subr.mxu0 0.0
    %846 = vmatpush1.msra.mxu0 0.0
    %847 = vmatprep.subr.mxu0 0.0
    %848 = vmatpush1.msra.mxu0 0.0
    %849 = vmatprep.subr.mxu0 0.0
    %850 = vmatpush1.msra.mxu0 0.0
    %851 = vmatprep.subr.mxu0 0.0
    %852 = vmatpush1.msra.mxu0 0.0
    %853 = vmatprep.subr.mxu0 0.0
    %854 = vmatpush1.msra.mxu0 0.0
    %855 = vmatprep.subr.mxu0 0.0
    %856 = vmatpush1.msra.mxu0 0.0
    %857 = vmatprep.subr.mxu0 0.0
    %858 = vmatpush1.msra.mxu0 0.0
    %859 = vmatprep.subr.mxu0 0.0
    %860 = vmatpush1.msra.mxu0 0.0
    %861 = vmatprep.subr.mxu0 0.0
    %862 = vmatpush1.msra.mxu0 0.0
    %863 = vmatprep.subr.mxu0 0.0
    %864 = vmatpush1.msra.mxu0 0.0
    %865 = vmatprep.subr.mxu0 0.0
    %866 = vmatpush1.msra.mxu0 0.0
    %867 = vmatprep.subr.mxu0 0.0
    %868 = vmatpush1.msra.mxu0 0.0
    %869 = vmatprep.subr.mxu0 0.0
    %870 = vmatpush1.msra.mxu0 0.0
    %871 = vmatprep.subr.mxu0 0.0
    %872 = vmatpush1.msra.mxu0 0.0
    %873 = vmatprep.subr.mxu0 0.0
    %874 = vmatpush1.msra.mxu0 0.0
    %875 = vmatprep.subr.mxu0 0.0
    %876 = vmatpush1.msra.mxu0 0.0
    %877 = vmatprep.subr.mxu0 0.0
    %878 = vmatpush1.msra.mxu0 0.0
    %879 = vmatprep.subr.mxu0 0.0
    %880 = vmatpush1.msra.mxu0 0.0
    %881 = vmatprep.subr.mxu0 0.0
    %882 = vmatpush1.msra.mxu0 0.0
    %883 = vmatprep.subr.mxu0 0.0
    %884 = vmatpush1.msra.mxu0 0.0
    %885 = vmatprep.subr.mxu0 0.0
    %886 = vmatpush1.msra.mxu0 0.0
    %887 = vmatprep.subr.mxu0 0.0
    %888 = vmatpush1.msra.mxu0 0.0
    %889 = vmatprep.subr.mxu0 0.0
    %890 = vmatpush1.msra.mxu0 0.0
    %891 = vmatprep.subr.mxu0 0.0
    %892 = vmatpush1.msra.mxu0 0.0
    %893 = vmatprep.subr.mxu0 0.0
    %894 = vmatpush1.msra.mxu0 0.0
    %895 = vmatprep.mubr.f32.mxu0 0.0
    %896 = vmatmul.mubr.f32.gmra.mrb[0].mxu0 %v829
    %v897 = vpop.f32.mrb[0].mxu0
    %v898 = vadd.f32 0.0, %v897
    %v899 = vpop.f32.mrb[0].mxu0
    %900 = vdwg.mxu0
    %v901 = vadd.f32 %v826, %v898
    %v902 = vld [vmem:[%s8 + $0x18] sm:$0xff]
    %v904 = vsel %vm139, %v667, 0
    %906 = vmatprep.subr.mxu0 0.0
    %907 = vmatpush1.msra.mxu0 %v902
    %908 = vmatprep.subr.mxu0 0.0
    %909 = vmatpush1.msra.mxu0 0.0
    %910 = vmatprep.subr.mxu0 0.0
    %911 = vmatpush1.msra.mxu0 0.0
    %912 = vmatprep.subr.mxu0 0.0
    %913 = vmatpush1.msra.mxu0 0.0
    %914 = vmatprep.subr.mxu0 0.0
    %915 = vmatpush1.msra.mxu0 0.0
    %916 = vmatprep.subr.mxu0 0.0
    %917 = vmatpush1.msra.mxu0 0.0
    %918 = vmatprep.subr.mxu0 0.0
    %919 = vmatpush1.msra.mxu0 0.0
    %920 = vmatprep.subr.mxu0 0.0
    %921 = vmatpush1.msra.mxu0 0.0
    %922 = vmatprep.subr.mxu0 0.0
    %923 = vmatpush1.msra.mxu0 0.0
    %924 = vmatprep.subr.mxu0 0.0
    %925 = vmatpush1.msra.mxu0 0.0
    %926 = vmatprep.subr.mxu0 0.0
    %927 = vmatpush1.msra.mxu0 0.0
    %928 = vmatprep.subr.mxu0 0.0
    %929 = vmatpush1.msra.mxu0 0.0
    %930 = vmatprep.subr.mxu0 0.0
    %931 = vmatpush1.msra.mxu0 0.0
    %932 = vmatprep.subr.mxu0 0.0
    %933 = vmatpush1.msra.mxu0 0.0
    %934 = vmatprep.subr.mxu0 0.0
    %935 = vmatpush1.msra.mxu0 0.0
    %936 = vmatprep.subr.mxu0 0.0
    %937 = vmatpush1.msra.mxu0 0.0
    %938 = vmatprep.subr.mxu0 0.0
    %939 = vmatpush1.msra.mxu0 0.0
    %940 = vmatprep.subr.mxu0 0.0
    %941 = vmatpush1.msra.mxu0 0.0
    %942 = vmatprep.subr.mxu0 0.0
    %943 = vmatpush1.msra.mxu0 0.0
    %944 = vmatprep.subr.mxu0 0.0
    %945 = vmatpush1.msra.mxu0 0.0
    %946 = vmatprep.subr.mxu0 0.0
    %947 = vmatpush1.msra.mxu0 0.0
    %948 = vmatprep.subr.mxu0 0.0
    %949 = vmatpush1.msra.mxu0 0.0
    %950 = vmatprep.subr.mxu0 0.0
    %951 = vmatpush1.msra.mxu0 0.0
    %952 = vmatprep.subr.mxu0 0.0
    %953 = vmatpush1.msra.mxu0 0.0
    %954 = vmatprep.subr.mxu0 0.0
    %955 = vmatpush1.msra.mxu0 0.0
    %956 = vmatprep.subr.mxu0 0.0
    %957 = vmatpush1.msra.mxu0 0.0
    %958 = vmatprep.subr.mxu0 0.0
    %959 = vmatpush1.msra.mxu0 0.0
    %960 = vmatprep.subr.mxu0 0.0
    %961 = vmatpush1.msra.mxu0 0.0
    %962 = vmatprep.subr.mxu0 0.0
    %963 = vmatpush1.msra.mxu0 0.0
    %964 = vmatprep.subr.mxu0 0.0
    %965 = vmatpush1.msra.mxu0 0.0
    %966 = vmatprep.subr.mxu0 0.0
    %967 = vmatpush1.msra.mxu0 0.0
    %968 = vmatprep.subr.mxu0 0.0
    %969 = vmatpush1.msra.mxu0 0.0
    %970 = vmatprep.mubr.f32.mxu0 0.0
    %971 = vmatmul.mubr.f32.gmra.mrb[0].mxu0 %v904
    %v972 = vpop.f32.mrb[0].mxu0
    %v973 = vadd.f32 0.0, %v972
    %v974 = vpop.f32.mrb[0].mxu0
    %975 = vdwg.mxu0
    %v976 = vadd.f32 %v901, %v973
    %v977 = vmax.f32 %v976, 0.0
    %v978 = vld [vmem:[%s9] sm:$0xff]
    %v979 = vld [vmem:[%s9 + $0x8] sm:$0xff]
    %v980 = vld [vmem:[%s9 + $0x10] sm:$0xff]
    %v981 = vld [vmem:[%s9 + $0x18] sm:$0xff]
    %v982 = vld [vmem:[#allocation8] sm:$0x1]
    %v984 = vlaneseq
    %v985 = vshrl.u32 %v984, 7
    %v986 = vsub.s32 0, %v985
    %v987 = vrot.slane %v982, %v986
    %v990 = vsel %vm460, %v977, 0
    %992 = vmatprep.subr.mxu0 0.0
    %993 = vmatpush1.msra.mxu0 %v978
    %994 = vmatprep.subr.mxu0 0.0
    %995 = vmatpush1.msra.mxu0 %v979
    %996 = vmatprep.subr.mxu0 0.0
    %997 = vmatpush1.msra.mxu0 %v980
    %998 = vmatprep.subr.mxu0 0.0
    %999 = vmatpush1.msra.mxu0 %v981
    %1000 = vmatprep.subr.mxu0 0.0
    %1001 = vmatpush1.msra.mxu0 0.0
    %1002 = vmatprep.subr.mxu0 0.0
    %1003 = vmatpush1.msra.mxu0 0.0
    %1004 = vmatprep.subr.mxu0 0.0
    %1005 = vmatpush1.msra.mxu0 0.0
    %1006 = vmatprep.subr.mxu0 0.0
    %1007 = vmatpush1.msra.mxu0 0.0
    %1008 = vmatprep.subr.mxu0 0.0
    %1009 = vmatpush1.msra.mxu0 0.0
    %1010 = vmatprep.subr.mxu0 0.0
    %1011 = vmatpush1.msra.mxu0 0.0
    %1012 = vmatprep.subr.mxu0 0.0
    %1013 = vmatpush1.msra.mxu0 0.0
    %1014 = vmatprep.subr.mxu0 0.0
    %1015 = vmatpush1.msra.mxu0 0.0
    %1016 = vmatprep.subr.mxu0 0.0
    %1017 = vmatpush1.msra.mxu0 0.0
    %1018 = vmatprep.subr.mxu0 0.0
    %1019 = vmatpush1.msra.mxu0 0.0
    %1020 = vmatprep.subr.mxu0 0.0
    %1021 = vmatpush1.msra.mxu0 0.0
    %1022 = vmatprep.subr.mxu0 0.0
    %1023 = vmatpush1.msra.mxu0 0.0
    %1024 = vmatprep.subr.mxu0 0.0
    %1025 = vmatpush1.msra.mxu0 0.0
    %1026 = vmatprep.subr.mxu0 0.0
    %1027 = vmatpush1.msra.mxu0 0.0
    %1028 = vmatprep.subr.mxu0 0.0
    %1029 = vmatpush1.msra.mxu0 0.0
    %1030 = vmatprep.subr.mxu0 0.0
    %1031 = vmatpush1.msra.mxu0 0.0
    %1032 = vmatprep.subr.mxu0 0.0
    %1033 = vmatpush1.msra.mxu0 0.0
    %1034 = vmatprep.subr.mxu0 0.0
    %1035 = vmatpush1.msra.mxu0 0.0
    %1036 = vmatprep.subr.mxu0 0.0
    %1037 = vmatpush1.msra.mxu0 0.0
    %1038 = vmatprep.subr.mxu0 0.0
    %1039 = vmatpush1.msra.mxu0 0.0
    %1040 = vmatprep.subr.mxu0 0.0
    %1041 = vmatpush1.msra.mxu0 0.0
    %1042 = vmatprep.subr.mxu0 0.0
    %1043 = vmatpush1.msra.mxu0 0.0
    %1044 = vmatprep.subr.mxu0 0.0
    %1045 = vmatpush1.msra.mxu0 0.0
    %1046 = vmatprep.subr.mxu0 0.0
    %1047 = vmatpush1.msra.mxu0 0.0
    %1048 = vmatprep.subr.mxu0 0.0
    %1049 = vmatpush1.msra.mxu0 0.0
    %1050 = vmatprep.subr.mxu0 0.0
    %1051 = vmatpush1.msra.mxu0 0.0
    %1052 = vmatprep.subr.mxu0 0.0
    %1053 = vmatpush1.msra.mxu0 0.0
    %1054 = vmatprep.subr.mxu0 0.0
    %1055 = vmatpush1.msra.mxu0 0.0
    %1056 = vmatprep.mubr.f32.mxu0 0.0
    %1057 = vmatmul.mubr.f32.gmra.mrb[0].mxu0 %v990
    %v1058 = vpop.f32.mrb[0].mxu0
    %v1059 = vadd.f32 %v987, %v1058
    %v1060 = vpop.f32.mrb[0].mxu0
    %1061 = vdwg.mxu0
    %v1062 = vmax.f32 %v1059, 0.0
    %v1063 = vld [vmem:[%s10] sm:$0xff]
    %v1064 = vld [vmem:[%s10 + $0x8] sm:$0xff]
    %v1065 = vld [vmem:[%s10 + $0x10] sm:$0xff]
    %v1066 = vld [vmem:[%s10 + $0x18] sm:$0xff]
    %v1067 = vld [vmem:[#allocation10] sm:$0x1]
    %v1069 = vlaneseq
    %v1070 = vshrl.u32 %v1069, 7
    %v1071 = vsub.s32 0, %v1070
    %v1072 = vrot.slane %v1067, %v1071
    %v1075 = vsel %vm460, %v1062, 0
    %1077 = vmatprep.subr.mxu0 0.0
    %1078 = vmatpush1.msra.mxu0 %v1063
    %1079 = vmatprep.subr.mxu0 0.0
    %1080 = vmatpush1.msra.mxu0 %v1064
    %1081 = vmatprep.subr.mxu0 0.0
    %1082 = vmatpush1.msra.mxu0 %v1065
    %1083 = vmatprep.subr.mxu0 0.0
    %1084 = vmatpush1.msra.mxu0 %v1066
    %1085 = vmatprep.subr.mxu0 0.0
    %1086 = vmatpush1.msra.mxu0 0.0
    %1087 = vmatprep.subr.mxu0 0.0
    %1088 = vmatpush1.msra.mxu0 0.0
    %1089 = vmatprep.subr.mxu0 0.0
    %1090 = vmatpush1.msra.mxu0 0.0
    %1091 = vmatprep.subr.mxu0 0.0
    %1092 = vmatpush1.msra.mxu0 0.0
    %1093 = vmatprep.subr.mxu0 0.0
    %1094 = vmatpush1.msra.mxu0 0.0
    %1095 = vmatprep.subr.mxu0 0.0
    %1096 = vmatpush1.msra.mxu0 0.0
    %1097 = vmatprep.subr.mxu0 0.0
    %1098 = vmatpush1.msra.mxu0 0.0
    %1099 = vmatprep.subr.mxu0 0.0
    %1100 = vmatpush1.msra.mxu0 0.0
    %1101 = vmatprep.subr.mxu0 0.0
    %1102 = vmatpush1.msra.mxu0 0.0
    %1103 = vmatprep.subr.mxu0 0.0
    %1104 = vmatpush1.msra.mxu0 0.0
    %1105 = vmatprep.subr.mxu0 0.0
    %1106 = vmatpush1.msra.mxu0 0.0
    %1107 = vmatprep.subr.mxu0 0.0
    %1108 = vmatpush1.msra.mxu0 0.0
    %1109 = vmatprep.subr.mxu0 0.0
    %1110 = vmatpush1.msra.mxu0 0.0
    %1111 = vmatprep.subr.mxu0 0.0
    %1112 = vmatpush1.msra.mxu0 0.0
    %1113 = vmatprep.subr.mxu0 0.0
    %1114 = vmatpush1.msra.mxu0 0.0
    %1115 = vmatprep.subr.mxu0 0.0
    %1116 = vmatpush1.msra.mxu0 0.0
    %1117 = vmatprep.subr.mxu0 0.0
    %1118 = vmatpush1.msra.mxu0 0.0
    %1119 = vmatprep.subr.mxu0 0.0
    %1120 = vmatpush1.msra.mxu0 0.0
    %1121 = vmatprep.subr.mxu0 0.0
    %1122 = vmatpush1.msra.mxu0 0.0
    %1123 = vmatprep.subr.mxu0 0.0
    %1124 = vmatpush1.msra.mxu0 0.0
    %1125 = vmatprep.subr.mxu0 0.0
    %1126 = vmatpush1.msra.mxu0 0.0
    %1127 = vmatprep.subr.mxu0 0.0
    %1128 = vmatpush1.msra.mxu0 0.0
    %1129 = vmatprep.subr.mxu0 0.0
    %1130 = vmatpush1.msra.mxu0 0.0
    %1131 = vmatprep.subr.mxu0 0.0
    %1132 = vmatpush1.msra.mxu0 0.0
    %1133 = vmatprep.subr.mxu0 0.0
    %1134 = vmatpush1.msra.mxu0 0.0
    %1135 = vmatprep.subr.mxu0 0.0
    %1136 = vmatpush1.msra.mxu0 0.0
    %1137 = vmatprep.subr.mxu0 0.0
    %1138 = vmatpush1.msra.mxu0 0.0
    %1139 = vmatprep.subr.mxu0 0.0
    %1140 = vmatpush1.msra.mxu0 0.0
    %1141 = vmatprep.mubr.f32.mxu0 0.0
    %1142 = vmatmul.mubr.f32.gmra.mrb[0].mxu0 %v1075
    %v1143 = vpop.f32.mrb[0].mxu0
    %v1144 = vadd.f32 %v1072, %v1143
    %v1145 = vpop.f32.mrb[0].mxu0
    %1146 = vdwg.mxu0
    %1147 = vst.msk [vmem:[%s14] sm:$0xff] %vm246, %v1144
    // Predicated region
    $region78: #{chunk_squeezer_forward.1} parent=1 // pred_check
      _
    $region79: #{chunk_squeezer_forward.1} parent=1 // pred_check_branch
      %1149 = sbr.rel (0) target = $region81
    $region80: #{chunk_squeezer_forward.1} parent=1 // pred_region
      _
    $region81: #{chunk_squeezer_forward.1} parent=1 // pred_fallthru
      _
    // Predicated region
    $region82: #{chunk_squeezer_forward.1} parent=1 // pred_check
      _
    $region83: #{chunk_squeezer_forward.1} parent=1 // pred_check_branch
      %1151 = sbr.rel (0) target = $region85
    $region84: #{chunk_squeezer_forward.1} parent=1 // pred_region
      _
    $region85: #{chunk_squeezer_forward.1} parent=1 // pred_fallthru
      _
    %1152 = vsyncpa [#allocation4], 1
    %1153 = vsyncpa [#allocation6], 1
    %1154 = vsyncpa [#allocation9], 1

</llo_original>
